<compile_context>
chip_gen: v7x
topology: tpu7x:2x2x1
jax: 0.10.0
libtpu: 0.0.40
codegen_flags: <defaults>
</compile_context>

<pallas_src>
import functools

import jax
import jax.numpy as jnp
from jax import lax
from jax.experimental import pallas as pl
from jax.experimental.pallas import tpu as pltpu


KSIZE = 7
PAD = (KSIZE - 1) // 2      # 3
ROW_OFF = 8                 # top/bottom halo rows in the pooled scratch (sublane aligned)


def _pick_tile_h(C, H, W, itemsize, target_bytes=1 << 21):
    """Largest H-tile that divides H, is native-sublane aligned, and keeps the
    per-step x block under ~target_bytes.  Falls back to the full H."""
    sub = max(8, 32 // itemsize)          # native sublane count for this dtype
    divisors = [th for th in range(sub, H, sub) if H % th == 0]
    for th in sorted(divisors, reverse=True):
        if C * th * W * itemsize <= target_bytes:
            return th
    return divisors[0] if divisors else H


# ----------------------------------------------------------------------------
# Pallas kernel: fused ChannelPool + 7x7 conv (+folded BN) + sigmoid + gate
# ----------------------------------------------------------------------------
def _spatial_gate_kernel(w_ref, b_ref, x_ref, o_ref,
                         pmax_ref, pmean_ref, carry_ref,
                         *, C, H, W, TH, NH):
    """Grid = (B, NH + 1).  At step t: pool H-tile t (t < NH), gate H-tile t-1.

    w_ref     : SMEM (98,) f32  -- conv weights * bn_scale, order (c, di, dj)
    b_ref     : SMEM (1,)  f32  -- folded BN bias
    x_ref     : VMEM (C, TH, W) native dtype -- input H-tile (batch squeezed)
    o_ref     : VMEM (C, TH, W) native dtype -- output H-tile t-1
    pmax_ref  : VMEM (H+16, W+6) f32  -- zero-padded channel-max map (persists)
    pmean_ref : VMEM (H+16, W+6) f32  -- zero-padded channel-mean map (persists)
    carry_ref : VMEM (2*C, TH, W) native dtype -- 2-slot x-tile carry buffer
    """
    t = pl.program_id(1)
    Wp = W + 2 * PAD
    f32 = jnp.float32

    # -- once per batch element: zero only the halo borders of the pooled maps.
    #    (Interior rows are overwritten by the pooling steps below before any
    #     conv band reads them.)
    @pl.when(t == 0)
    def _zero_halo():
        zband = jnp.zeros((ROW_OFF, Wp), f32)
        zcol = jnp.zeros((H, PAD), f32)
        for ref in (pmax_ref, pmean_ref):
            ref[0:ROW_OFF, :] = zband                                  # top
            ref[ROW_OFF + H:ROW_OFF + H + ROW_OFF, :] = zband          # bottom
            ref[ROW_OFF:ROW_OFF + H, 0:PAD] = zcol                     # left
            ref[ROW_OFF:ROW_OFF + H, PAD + W:Wp] = zcol                # right

    # -- phase 1 (steps 0..NH-1): channel max/mean pool of H-tile t, streaming
    #    one channel at a time; stash the native-dtype tile in the carry slot.
    @pl.when(t < NH)
    def _pool():
        slot_base = (t % 2) * C

        def body(c, carry):
            m, s = carry
            xc = x_ref[c]                          # (TH, W), native dtype
            carry_ref[slot_base + c] = xc
            xcf = xc.astype(f32)
            return jnp.maximum(m, xcf), s + xcf

        init = (jnp.full((TH, W), -jnp.inf, f32), jnp.zeros((TH, W), f32))
        cmax, csum = lax.fori_loop(0, C, body, init)

        row0 = ROW_OFF + t * TH
        if TH % 8 == 0 or NH == 1:                 # always true by construction
            row0 = pl.multiple_of(row0, 8)
        pmax_ref[pl.ds(row0, TH), PAD:PAD + W] = cmax
        pmean_ref[pl.ds(row0, TH), PAD:PAD + W] = csum * (1.0 / C)

    # -- phase 2 (steps 1..NH): 7x7 conv + folded BN + sigmoid + gate tile t-1.
    @pl.when(t > 0)
    def _gate():
        tg = t - 1
        gbase = (tg % 2) * C
        sup0 = tg * TH
        if TH % 8 == 0 or NH == 1:
            sup0 = pl.multiple_of(sup0, 8)
        nsup = TH + 2 * ROW_OFF                    # covers all 7 shifted bands

        def conv_plane(ref, w_off):
            sup = ref[pl.ds(sup0, nsup), :]        # one aligned band load, (nsup, Wp)
            accs = [jnp.zeros((TH, W), f32), jnp.zeros((TH, W), f32)]
            for di in range(KSIZE):
                r0 = ROW_OFF - PAD + di            # static offset inside the superset
                band = sup[r0:r0 + TH, :]          # static in-register sublane slice
                part = accs[di % 2]
                for dj in range(KSIZE):
                    part = part + band[:, dj:dj + W] * w_ref[w_off + di * KSIZE + dj]
                accs[di % 2] = part
            return accs[0] + accs[1]

        y = conv_plane(pmax_ref, 0) + conv_plane(pmean_ref, KSIZE * KSIZE) + b_ref[0]
        scale = jax.nn.sigmoid(y)                  # (TH, W) f32

        def gate_body(c, _):
            xc = carry_ref[gbase + c]              # native dtype
            o_ref[c] = (xc.astype(f32) * scale).astype(o_ref.dtype)
            return 0

        lax.fori_loop(0, C, gate_body, 0)


# ----------------------------------------------------------------------------
# Wrapper
# ----------------------------------------------------------------------------
@jax.jit
def spatial_gate_forward(x, w_folded, b_folded):
    """x: (B, C, H, W) NCHW, native dtype (f32 or bf16).  Output: same dtype."""
    B, C, H, W = x.shape
    itemsize = jnp.dtype(x.dtype).itemsize
    TH = _pick_tile_h(C, H, W, itemsize)
    NH = H // TH
    NT = NH + 1                                    # one drain step to gate the last tile

    kernel = functools.partial(_spatial_gate_kernel, C=C, H=H, W=W, TH=TH, NH=NH)

    blk_bytes = C * TH * W * itemsize
    pad_bytes = 2 * (H + 2 * ROW_OFF) * (W + 2 * PAD) * 4
    vmem_limit = int(min(64 << 20, max(16 << 20, 8 * blk_bytes + pad_bytes + (1 << 20))))

    cost = pl.CostEstimate(
        flops=2 * 2 * KSIZE * KSIZE * B * H * W + 3 * B * C * H * W,
        transcendentals=B * H * W,
        bytes_accessed=2 * B * C * H * W * itemsize + 99 * 4,
    )

    return pl.pallas_call(
        kernel,
        out_shape=jax.ShapeDtypeStruct((B, C, H, W), x.dtype),
        grid_spec=pltpu.PrefetchScalarGridSpec(
            num_scalar_prefetch=0,
            grid=(B, NT),
            in_specs=[
                pl.BlockSpec(memory_space=pltpu.MemorySpace.SMEM),   # folded conv weights
                pl.BlockSpec(memory_space=pltpu.MemorySpace.SMEM),   # folded BN bias
                # pooling input: H-tile t; clamped on the drain step (same block
                # index as the previous step => Pallas skips the copy, so x is
                # still DMA'd from HBM exactly once).
                pl.BlockSpec((None, C, TH, W),
                             lambda b, t: (b, 0, jnp.minimum(t, NH - 1), 0)),
            ],
            out_specs=pl.BlockSpec((None, C, TH, W),
                                   lambda b, t: (b, 0, jnp.maximum(t - 1, 0), 0)),
            scratch_shapes=[
                pltpu.VMEM((H + 2 * ROW_OFF, W + 2 * PAD), jnp.float32),  # padded max map
                pltpu.VMEM((H + 2 * ROW_OFF, W + 2 * PAD), jnp.float32),  # padded mean map
                pltpu.VMEM((2 * C, TH, W), x.dtype),                      # x-tile carry (2 slots)
            ],
        ),
        compiler_params=pltpu.CompilerParams(
            dimension_semantics=("parallel", "arbitrary"),   # batch shards across v7x TCs
            vmem_limit_bytes=vmem_limit,
        ),
        cost_estimate=cost,
    )(w_folded, b_folded, x)


# ----------------------------------------------------------------------------
# Parameters + eval-mode BatchNorm folding (done ONCE, outside the jit)
# ----------------------------------------------------------------------------
def init_params(key):
    kw, kg, kb, km, kv = jax.random.split(key, 5)
    return {
        "conv_w": jax.random.normal(kw, (1, 2, KSIZE, KSIZE), jnp.float32) * 0.1,
        "bn_gamma": 1.0 + 0.1 * jax.random.normal(kg, (1,), jnp.float32),
        "bn_beta": 0.1 * jax.random.normal(kb, (1,), jnp.float32),
        "bn_mean": 0.1 * jax.random.normal(km, (1,), jnp.float32),
        "bn_var": jax.random.uniform(kv, (1,), jnp.float32, minval=0.5, maxval=1.5),
        "bn_eps": 1e-5,
    }


def fold_bn(params):
    """Fold eval-mode BatchNorm into the bias-free conv: BN(conv) = conv*s + t."""
    s = params["bn_gamma"] / jnp.sqrt(params["bn_var"] + params["bn_eps"])   # (1,)
    w = params["conv_w"] * s[:, None, None, None]                            # (1,2,7,7)
    b = params["bn_beta"] - params["bn_mean"] * s                            # (1,)
    w_flat = w[0].reshape(2 * KSIZE * KSIZE)      # order (c, di, dj) = kernel's indexing
    return w_flat.astype(jnp.float32), b.astype(jnp.float32)


# ----------------------------------------------------------------------------
# Pure-JAX reference mirroring the PyTorch forward (eval-mode BN)
# ----------------------------------------------------------------------------
def spatial_gate_reference(x, params):
    cmax = jnp.max(x, axis=1, keepdims=True)
    cmean = jnp.mean(x, axis=1, keepdims=True)
    pooled = jnp.concatenate([cmax, cmean], axis=1)            # (B, 2, H, W)
    y = jax.lax.conv_general_dilated(
        pooled, params["conv_w"], window_strides=(1, 1),
        padding=[(PAD, PAD), (PAD, PAD)],
        dimension_numbers=("NCHW", "OIHW", "NCHW"),
        precision=jax.lax.Precision.HIGHEST)
    s = params["bn_gamma"] / jnp.sqrt(params["bn_var"] + params["bn_eps"])
    y = (y - params["bn_mean"][None, :, None, None]) * s[None, :, None, None] \
        + params["bn_beta"][None, :, None, None]
    return x * jax.nn.sigmoid(y)


# ----------------------------------------------------------------------------
if __name__ == "__main__":
    key = jax.random.PRNGKey(0)
    k_x, k_p = jax.random.split(key)
    B, C, H, W = 2, 4, 16, 16
    x = jax.random.normal(k_x, (B, C, H, W), jnp.float32)

    params = init_params(k_p)
    w_folded, b_folded = fold_bn(params)   # packed once, outside the jitted forward

    # f32 path
    out = jax.block_until_ready(spatial_gate_forward(x, w_folded, b_folded))
    assert out.shape == (B, C, H, W), out.shape
    ref = spatial_gate_reference(x, params)
    err = float(jnp.max(jnp.abs(out - ref)))
    assert jnp.allclose(out, ref, atol=1e-4, rtol=1e-4), err

    # native-bf16 path (no wrapper upcast: x is DMA'd as bf16, upcast per channel in-kernel)
    x_bf = x.astype(jnp.bfloat16)
    out_bf = jax.block_until_ready(spatial_gate_forward(x_bf, w_folded, b_folded))
    assert out_bf.dtype == jnp.bfloat16
    ref_bf = spatial_gate_reference(x_bf.astype(jnp.float32), params)
    err_bf = float(jnp.max(jnp.abs(out_bf.astype(jnp.float32) - ref_bf)))
    assert jnp.allclose(out_bf.astype(jnp.float32), ref_bf, atol=5e-2, rtol=5e-2), err_bf

    print("KERNEL_OK")
</pallas_src>

<mosaic_0001>
module attributes {stable_mosaic.version = 11 : i64} {
  func.func @_spatial_gate_kernel(%arg0: i32, %arg1: i32, %arg2: memref<98xf32, #tpu.memory_space<smem>>, %arg3: memref<1xf32, #tpu.memory_space<smem>>, %arg4: memref<1x4x8x16xf32, #tpu.memory_space<vmem>>, %arg5: memref<1x4x8x16xf32, #tpu.memory_space<vmem>>, %arg6: memref<32x22xf32, #tpu.memory_space<vmem>>, %arg7: memref<32x22xf32, #tpu.memory_space<vmem>>, %arg8: memref<8x8x16xf32, #tpu.memory_space<vmem>>) attributes {dimension_semantics = [#tpu.dimension_semantics<parallel>, #tpu.dimension_semantics<arbitrary>], iteration_bounds = array<i64: 2, 3>, scalar_prefetch = 0 : i64, scratch_operands = 3 : i64, tpu.core_type = #tpu.core_type<tc>, window_params = [{transform_indices = @transform_0, window_bounds = array<i64: 98>}, {transform_indices = @transform_1, window_bounds = array<i64: 1>}, {transform_indices = @transform_2, window_bounds = array<i64: 1, 4, 8, 16>}, {transform_indices = @transform_3, window_bounds = array<i64: 1, 4, 8, 16>}]} {
    %c0_i32 = arith.constant 0 : i32
    %0 = arith.cmpi eq, %arg1, %c0_i32 : i32
    %1 = arith.extui %0 : i1 to i32
    %c0_i32_0 = arith.constant 0 : i32
    %2 = arith.cmpi ne, %1, %c0_i32_0 : i32
    scf.if %2 {
      %cst = arith.constant 0.000000e+00 : f32
      %9 = vector.broadcast %cst : f32 to vector<8x22xf32>
      %cst_4 = arith.constant 0.000000e+00 : f32
      %10 = vector.broadcast %cst_4 : f32 to vector<16x3xf32>
      %c0 = arith.constant 0 : index
      %c0_5 = arith.constant 0 : index
      %11 = vector.load %arg6[%c0, %c0_5] : memref<32x22xf32, #tpu.memory_space<vmem>>, vector<8x22xf32>
      tpu.vector_store %arg6[%c0, %c0_5], %9 {strides = array<i32>} : memref<32x22xf32, #tpu.memory_space<vmem>>, vector<8x22xf32>,
      %c24 = arith.constant 24 : index
      %c0_6 = arith.constant 0 : index
      %12 = vector.load %arg6[%c24, %c0_6] : memref<32x22xf32, #tpu.memory_space<vmem>>, vector<8x22xf32>
      tpu.vector_store %arg6[%c24, %c0_6], %9 {strides = array<i32>} : memref<32x22xf32, #tpu.memory_space<vmem>>, vector<8x22xf32>,
      %c8 = arith.constant 8 : index
      %c0_7 = arith.constant 0 : index
      %13 = vector.load %arg6[%c8, %c0_7] : memref<32x22xf32, #tpu.memory_space<vmem>>, vector<16x3xf32>
      tpu.vector_store %arg6[%c8, %c0_7], %10 {strides = array<i32>} : memref<32x22xf32, #tpu.memory_space<vmem>>, vector<16x3xf32>,
      %c8_8 = arith.constant 8 : index
      %c19 = arith.constant 19 : index
      %14 = vector.load %arg6[%c8_8, %c19] : memref<32x22xf32, #tpu.memory_space<vmem>>, vector<16x3xf32>
      tpu.vector_store %arg6[%c8_8, %c19], %10 {strides = array<i32>} : memref<32x22xf32, #tpu.memory_space<vmem>>, vector<16x3xf32>,
      %c0_9 = arith.constant 0 : index
      %c0_10 = arith.constant 0 : index
      %15 = vector.load %arg7[%c0_9, %c0_10] : memref<32x22xf32, #tpu.memory_space<vmem>>, vector<8x22xf32>
      tpu.vector_store %arg7[%c0_9, %c0_10], %9 {strides = array<i32>} : memref<32x22xf32, #tpu.memory_space<vmem>>, vector<8x22xf32>,
      %c24_11 = arith.constant 24 : index
      %c0_12 = arith.constant 0 : index
      %16 = vector.load %arg7[%c24_11, %c0_12] : memref<32x22xf32, #tpu.memory_space<vmem>>, vector<8x22xf32>
      tpu.vector_store %arg7[%c24_11, %c0_12], %9 {strides = array<i32>} : memref<32x22xf32, #tpu.memory_space<vmem>>, vector<8x22xf32>,
      %c8_13 = arith.constant 8 : index
      %c0_14 = arith.constant 0 : index
      %17 = vector.load %arg7[%c8_13, %c0_14] : memref<32x22xf32, #tpu.memory_space<vmem>>, vector<16x3xf32>
      tpu.vector_store %arg7[%c8_13, %c0_14], %10 {strides = array<i32>} : memref<32x22xf32, #tpu.memory_space<vmem>>, vector<16x3xf32>,
      %c8_15 = arith.constant 8 : index
      %c19_16 = arith.constant 19 : index
      %18 = vector.load %arg7[%c8_15, %c19_16] : memref<32x22xf32, #tpu.memory_space<vmem>>, vector<16x3xf32>
      tpu.vector_store %arg7[%c8_15, %c19_16], %10 {strides = array<i32>} : memref<32x22xf32, #tpu.memory_space<vmem>>, vector<16x3xf32>,
    } else {
    }
    %c2_i32 = arith.constant 2 : i32
    %3 = arith.cmpi slt, %arg1, %c2_i32 : i32
    %4 = arith.extui %3 : i1 to i32
    %c0_i32_1 = arith.constant 0 : i32
    %5 = arith.cmpi ne, %4, %c0_i32_1 : i32
    scf.if %5 {
      %c2_i32_4 = arith.constant 2 : i32
      %c0_i32_5 = arith.constant 0 : i32
      %9 = arith.cmpi eq, %c2_i32_4, %c0_i32_5 : i32
      %c1_i32 = arith.constant 1 : i32
      %10 = arith.select %9, %c1_i32, %c2_i32_4 : i32
      %11 = arith.remsi %arg1, %10 : i32
      %c0_i32_6 = arith.constant 0 : i32
      %12 = arith.cmpi ne, %11, %c0_i32_6 : i32
      %c0_i32_7 = arith.constant 0 : i32
      %13 = arith.cmpi slt, %11, %c0_i32_7 : i32
      %c0_i32_8 = arith.constant 0 : i32
      %14 = arith.cmpi slt, %10, %c0_i32_8 : i32
      %15 = arith.xori %13, %14 : i1
      %16 = arith.andi %15, %12 : i1
      %17 = arith.addi %11, %10 : i32
      %18 = arith.select %16, %17, %11 : i32
      %c4_i32 = arith.constant 4 : i32
      %19 = arith.muli %18, %c4_i32 : i32
      %cst = arith.constant 0xFF800000 : f32
      %20 = vector.broadcast %cst : f32 to vector<8x16xf32>
      %cst_9 = arith.constant 0.000000e+00 : f32
      %21 = vector.broadcast %cst_9 : f32 to vector<8x16xf32>
      %c0_i32_10 = arith.constant 0 : i32
      %c4_i32_11 = arith.constant 4 : i32
      %22 = arith.addi %c0_i32_10, %c4_i32_11 : i32
      %c1_i32_12 = arith.constant 1 : i32
      %23:2 = scf.for %arg9 = %c0_i32_10 to %22 step %c1_i32_12 iter_args(%arg10 = %20, %arg11 = %21) -> (vector<8x16xf32>, vector<8x16xf32>)  : i32 {
        %c0 = arith.constant 0 : index
        %33 = arith.index_cast %arg9 : i32 to index
        %c0_17 = arith.constant 0 : index
        %c0_18 = arith.constant 0 : index
        %34 = vector.load %arg4[%c0, %33, %c0_17, %c0_18] : memref<1x4x8x16xf32, #tpu.memory_space<vmem>>, vector<1x1x8x16xf32>
        %35 = vector.shape_cast %34 : vector<1x1x8x16xf32> to vector<8x16xf32>
        %36 = arith.addi %19, %arg9 : i32
        %37 = arith.index_cast %36 : i32 to index
        %c0_19 = arith.constant 0 : index
        %c0_20 = arith.constant 0 : index
        %38 = vector.load %arg8[%37, %c0_19, %c0_20] : memref<8x8x16xf32, #tpu.memory_space<vmem>>, vector<1x8x16xf32>
        %39 = vector.shape_cast %38 : vector<1x8x16xf32> to vector<8x16xf32>
        %40 = vector.shape_cast %35 : vector<8x16xf32> to vector<1x8x16xf32>
        tpu.vector_store %arg8[%37, %c0_19, %c0_20], %40 {strides = array<i32>} : memref<8x8x16xf32, #tpu.memory_space<vmem>>, vector<1x8x16xf32>,
        %41 = arith.maximumf %arg10, %35 : vector<8x16xf32>
        %42 = arith.addf %arg11, %35 : vector<8x16xf32>
        scf.yield %41, %42 : vector<8x16xf32>, vector<8x16xf32>
      }
      %c4_i32_13 = arith.constant 4 : i32
      %c8_i32 = arith.constant 8 : i32
      %24 = arith.muli %arg1, %c8_i32 : i32
      %c8_i32_14 = arith.constant 8 : i32
      %25 = arith.addi %c8_i32_14, %24 : i32
      %26 = tpu.assume_multiple %25, 8 : i32
      %27 = arith.index_cast %26 : i32 to index
      %c3 = arith.constant 3 : index
      %28 = vector.load %arg6[%27, %c3] : memref<32x22xf32, #tpu.memory_space<vmem>>, vector<8x16xf32>
      tpu.vector_store %arg6[%27, %c3], %23#0 {strides = array<i32>} : memref<32x22xf32, #tpu.memory_space<vmem>>, vector<8x16xf32>,
      %cst_15 = arith.constant 2.500000e-01 : f32
      %29 = vector.broadcast %cst_15 : f32 to vector<8x16xf32>
      %30 = arith.mulf %23#1, %29 : vector<8x16xf32>
      %31 = arith.index_cast %26 : i32 to index
      %c3_16 = arith.constant 3 : index
      %32 = vector.load %arg7[%31, %c3_16] : memref<32x22xf32, #tpu.memory_space<vmem>>, vector<8x16xf32>
      tpu.vector_store %arg7[%31, %c3_16], %30 {strides = array<i32>} : memref<32x22xf32, #tpu.memory_space<vmem>>, vector<8x16xf32>,
    } else {
    }
    %c0_i32_2 = arith.constant 0 : i32
    %6 = arith.cmpi sgt, %arg1, %c0_i32_2 : i32
    %7 = arith.extui %6 : i1 to i32
    %c0_i32_3 = arith.constant 0 : i32
    %8 = arith.cmpi ne, %7, %c0_i32_3 : i32
    scf.if %8 {
      %c1_i32 = arith.constant 1 : i32
      %9 = arith.subi %arg1, %c1_i32 : i32
      %c2_i32_4 = arith.constant 2 : i32
      %c0_i32_5 = arith.constant 0 : i32
      %10 = arith.cmpi eq, %c2_i32_4, %c0_i32_5 : i32
      %c1_i32_6 = arith.constant 1 : i32
      %11 = arith.select %10, %c1_i32_6, %c2_i32_4 : i32
      %12 = arith.remsi %9, %11 : i32
      %c0_i32_7 = arith.constant 0 : i32
      %13 = arith.cmpi ne, %12, %c0_i32_7 : i32
      %c0_i32_8 = arith.constant 0 : i32
      %14 = arith.cmpi slt, %12, %c0_i32_8 : i32
      %c0_i32_9 = arith.constant 0 : i32
      %15 = arith.cmpi slt, %11, %c0_i32_9 : i32
      %16 = arith.xori %14, %15 : i1
      %17 = arith.andi %16, %13 : i1
      %18 = arith.addi %12, %11 : i32
      %19 = arith.select %17, %18, %12 : i32
      %c4_i32 = arith.constant 4 : i32
      %20 = arith.muli %19, %c4_i32 : i32
      %c8_i32 = arith.constant 8 : i32
      %21 = arith.muli %9, %c8_i32 : i32
      %22 = tpu.assume_multiple %21, 8 : i32
      %23 = arith.index_cast %22 : i32 to index
      %c0 = arith.constant 0 : index
      %24 = vector.load %arg6[%23, %c0] : memref<32x22xf32, #tpu.memory_space<vmem>>, vector<24x22xf32>
      %cst = arith.constant 0.000000e+00 : f32
      %25 = vector.broadcast %cst : f32 to vector<8x16xf32>
      %cst_10 = arith.constant 0.000000e+00 : f32
      %26 = vector.broadcast %cst_10 : f32 to vector<8x16xf32>
      %27 = vector.extract_strided_slice %24 {offsets = [5, 0], sizes = [8, 22], strides = [1, 1]} : vector<24x22xf32> to vector<8x22xf32>
      %28 = vector.extract_strided_slice %27 {offsets = [0, 0], sizes = [8, 16], strides = [1, 1]} : vector<8x22xf32> to vector<8x16xf32>
      %c0_11 = arith.constant 0 : index
      %29 = memref.load %arg2[%c0_11] : memref<98xf32, #tpu.memory_space<smem>>
      %30 = vector.broadcast %29 : f32 to vector<8x16xf32>
      %31 = arith.mulf %28, %30 : vector<8x16xf32>
      %32 = arith.addf %25, %31 : vector<8x16xf32>
      %33 = vector.extract_strided_slice %27 {offsets = [0, 1], sizes = [8, 16], strides = [1, 1]} : vector<8x22xf32> to vector<8x16xf32>
      %c1 = arith.constant 1 : index
      %34 = memref.load %arg2[%c1] : memref<98xf32, #tpu.memory_space<smem>>
      %35 = vector.broadcast %34 : f32 to vector<8x16xf32>
      %36 = arith.mulf %33, %35 : vector<8x16xf32>
      %37 = arith.addf %32, %36 : vector<8x16xf32>
      %38 = vector.extract_strided_slice %27 {offsets = [0, 2], sizes = [8, 16], strides = [1, 1]} : vector<8x22xf32> to vector<8x16xf32>
      %c2 = arith.constant 2 : index
      %39 = memref.load %arg2[%c2] : memref<98xf32, #tpu.memory_space<smem>>
      %40 = vector.broadcast %39 : f32 to vector<8x16xf32>
      %41 = arith.mulf %38, %40 : vector<8x16xf32>
      %42 = arith.addf %37, %41 : vector<8x16xf32>
      %43 = vector.extract_strided_slice %27 {offsets = [0, 3], sizes = [8, 16], strides = [1, 1]} : vector<8x22xf32> to vector<8x16xf32>
      %c3 = arith.constant 3 : index
      %44 = memref.load %arg2[%c3] : memref<98xf32, #tpu.memory_space<smem>>
      %45 = vector.broadcast %44 : f32 to vector<8x16xf32>
      %46 = arith.mulf %43, %45 : vector<8x16xf32>
      %47 = arith.addf %42, %46 : vector<8x16xf32>
      %48 = vector.extract_strided_slice %27 {offsets = [0, 4], sizes = [8, 16], strides = [1, 1]} : vector<8x22xf32> to vector<8x16xf32>
      %c4 = arith.constant 4 : index
      %49 = memref.load %arg2[%c4] : memref<98xf32, #tpu.memory_space<smem>>
      %50 = vector.broadcast %49 : f32 to vector<8x16xf32>
      %51 = arith.mulf %48, %50 : vector<8x16xf32>
      %52 = arith.addf %47, %51 : vector<8x16xf32>
      %53 = vector.extract_strided_slice %27 {offsets = [0, 5], sizes = [8, 16], strides = [1, 1]} : vector<8x22xf32> to vector<8x16xf32>
      %c5 = arith.constant 5 : index
      %54 = memref.load %arg2[%c5] : memref<98xf32, #tpu.memory_space<smem>>
      %55 = vector.broadcast %54 : f32 to vector<8x16xf32>
      %56 = arith.mulf %53, %55 : vector<8x16xf32>
      %57 = arith.addf %52, %56 : vector<8x16xf32>
      %58 = vector.extract_strided_slice %27 {offsets = [0, 6], sizes = [8, 16], strides = [1, 1]} : vector<8x22xf32> to vector<8x16xf32>
      %c6 = arith.constant 6 : index
      %59 = memref.load %arg2[%c6] : memref<98xf32, #tpu.memory_space<smem>>
      %60 = vector.broadcast %59 : f32 to vector<8x16xf32>
      %61 = arith.mulf %58, %60 : vector<8x16xf32>
      %62 = arith.addf %57, %61 : vector<8x16xf32>
      %63 = vector.extract_strided_slice %24 {offsets = [6, 0], sizes = [8, 22], strides = [1, 1]} : vector<24x22xf32> to vector<8x22xf32>
      %64 = vector.extract_strided_slice %63 {offsets = [0, 0], sizes = [8, 16], strides = [1, 1]} : vector<8x22xf32> to vector<8x16xf32>
      %c7 = arith.constant 7 : index
      %65 = memref.load %arg2[%c7] : memref<98xf32, #tpu.memory_space<smem>>
      %66 = vector.broadcast %65 : f32 to vector<8x16xf32>
      %67 = arith.mulf %64, %66 : vector<8x16xf32>
      %68 = arith.addf %26, %67 : vector<8x16xf32>
      %69 = vector.extract_strided_slice %63 {offsets = [0, 1], sizes = [8, 16], strides = [1, 1]} : vector<8x22xf32> to vector<8x16xf32>
      %c8 = arith.constant 8 : index
      %70 = memref.load %arg2[%c8] : memref<98xf32, #tpu.memory_space<smem>>
      %71 = vector.broadcast %70 : f32 to vector<8x16xf32>
      %72 = arith.mulf %69, %71 : vector<8x16xf32>
      %73 = arith.addf %68, %72 : vector<8x16xf32>
      %74 = vector.extract_strided_slice %63 {offsets = [0, 2], sizes = [8, 16], strides = [1, 1]} : vector<8x22xf32> to vector<8x16xf32>
      %c9 = arith.constant 9 : index
      %75 = memref.load %arg2[%c9] : memref<98xf32, #tpu.memory_space<smem>>
      %76 = vector.broadcast %75 : f32 to vector<8x16xf32>
      %77 = arith.mulf %74, %76 : vector<8x16xf32>
      %78 = arith.addf %73, %77 : vector<8x16xf32>
      %79 = vector.extract_strided_slice %63 {offsets = [0, 3], sizes = [8, 16], strides = [1, 1]} : vector<8x22xf32> to vector<8x16xf32>
      %c10 = arith.constant 10 : index
      %80 = memref.load %arg2[%c10] : memref<98xf32, #tpu.memory_space<smem>>
      %81 = vector.broadcast %80 : f32 to vector<8x16xf32>
      %82 = arith.mulf %79, %81 : vector<8x16xf32>
      %83 = arith.addf %78, %82 : vector<8x16xf32>
      %84 = vector.extract_strided_slice %63 {offsets = [0, 4], sizes = [8, 16], strides = [1, 1]} : vector<8x22xf32> to vector<8x16xf32>
      %c11 = arith.constant 11 : index
      %85 = memref.load %arg2[%c11] : memref<98xf32, #tpu.memory_space<smem>>
      %86 = vector.broadcast %85 : f32 to vector<8x16xf32>
      %87 = arith.mulf %84, %86 : vector<8x16xf32>
      %88 = arith.addf %83, %87 : vector<8x16xf32>
      %89 = vector.extract_strided_slice %63 {offsets = [0, 5], sizes = [8, 16], strides = [1, 1]} : vector<8x22xf32> to vector<8x16xf32>
      %c12 = arith.constant 12 : index
      %90 = memref.load %arg2[%c12] : memref<98xf32, #tpu.memory_space<smem>>
      %91 = vector.broadcast %90 : f32 to vector<8x16xf32>
      %92 = arith.mulf %89, %91 : vector<8x16xf32>
      %93 = arith.addf %88, %92 : vector<8x16xf32>
      %94 = vector.extract_strided_slice %63 {offsets = [0, 6], sizes = [8, 16], strides = [1, 1]} : vector<8x22xf32> to vector<8x16xf32>
      %c13 = arith.constant 13 : index
      %95 = memref.load %arg2[%c13] : memref<98xf32, #tpu.memory_space<smem>>
      %96 = vector.broadcast %95 : f32 to vector<8x16xf32>
      %97 = arith.mulf %94, %96 : vector<8x16xf32>
      %98 = arith.addf %93, %97 : vector<8x16xf32>
      %99 = vector.extract_strided_slice %24 {offsets = [7, 0], sizes = [8, 22], strides = [1, 1]} : vector<24x22xf32> to vector<8x22xf32>
      %100 = vector.extract_strided_slice %99 {offsets = [0, 0], sizes = [8, 16], strides = [1, 1]} : vector<8x22xf32> to vector<8x16xf32>
      %c14 = arith.constant 14 : index
      %101 = memref.load %arg2[%c14] : memref<98xf32, #tpu.memory_space<smem>>
      %102 = vector.broadcast %101 : f32 to vector<8x16xf32>
      %103 = arith.mulf %100, %102 : vector<8x16xf32>
      %104 = arith.addf %62, %103 : vector<8x16xf32>
      %105 = vector.extract_strided_slice %99 {offsets = [0, 1], sizes = [8, 16], strides = [1, 1]} : vector<8x22xf32> to vector<8x16xf32>
      %c15 = arith.constant 15 : index
      %106 = memref.load %arg2[%c15] : memref<98xf32, #tpu.memory_space<smem>>
      %107 = vector.broadcast %106 : f32 to vector<8x16xf32>
      %108 = arith.mulf %105, %107 : vector<8x16xf32>
      %109 = arith.addf %104, %108 : vector<8x16xf32>
      %110 = vector.extract_strided_slice %99 {offsets = [0, 2], sizes = [8, 16], strides = [1, 1]} : vector<8x22xf32> to vector<8x16xf32>
      %c16 = arith.constant 16 : index
      %111 = memref.load %arg2[%c16] : memref<98xf32, #tpu.memory_space<smem>>
      %112 = vector.broadcast %111 : f32 to vector<8x16xf32>
      %113 = arith.mulf %110, %112 : vector<8x16xf32>
      %114 = arith.addf %109, %113 : vector<8x16xf32>
      %115 = vector.extract_strided_slice %99 {offsets = [0, 3], sizes = [8, 16], strides = [1, 1]} : vector<8x22xf32> to vector<8x16xf32>
      %c17 = arith.constant 17 : index
      %116 = memref.load %arg2[%c17] : memref<98xf32, #tpu.memory_space<smem>>
      %117 = vector.broadcast %116 : f32 to vector<8x16xf32>
      %118 = arith.mulf %115, %117 : vector<8x16xf32>
      %119 = arith.addf %114, %118 : vector<8x16xf32>
      %120 = vector.extract_strided_slice %99 {offsets = [0, 4], sizes = [8, 16], strides = [1, 1]} : vector<8x22xf32> to vector<8x16xf32>
      %c18 = arith.constant 18 : index
      %121 = memref.load %arg2[%c18] : memref<98xf32, #tpu.memory_space<smem>>
      %122 = vector.broadcast %121 : f32 to vector<8x16xf32>
      %123 = arith.mulf %120, %122 : vector<8x16xf32>
      %124 = arith.addf %119, %123 : vector<8x16xf32>
      %125 = vector.extract_strided_slice %99 {offsets = [0, 5], sizes = [8, 16], strides = [1, 1]} : vector<8x22xf32> to vector<8x16xf32>
      %c19 = arith.constant 19 : index
      %126 = memref.load %arg2[%c19] : memref<98xf32, #tpu.memory_space<smem>>
      %127 = vector.broadcast %126 : f32 to vector<8x16xf32>
      %128 = arith.mulf %125, %127 : vector<8x16xf32>
      %129 = arith.addf %124, %128 : vector<8x16xf32>
      %130 = vector.extract_strided_slice %99 {offsets = [0, 6], sizes = [8, 16], strides = [1, 1]} : vector<8x22xf32> to vector<8x16xf32>
      %c20 = arith.constant 20 : index
      %131 = memref.load %arg2[%c20] : memref<98xf32, #tpu.memory_space<smem>>
      %132 = vector.broadcast %131 : f32 to vector<8x16xf32>
      %133 = arith.mulf %130, %132 : vector<8x16xf32>
      %134 = arith.addf %129, %133 : vector<8x16xf32>
      %135 = vector.extract_strided_slice %24 {offsets = [8, 0], sizes = [8, 22], strides = [1, 1]} : vector<24x22xf32> to vector<8x22xf32>
      %136 = vector.extract_strided_slice %135 {offsets = [0, 0], sizes = [8, 16], strides = [1, 1]} : vector<8x22xf32> to vector<8x16xf32>
      %c21 = arith.constant 21 : index
      %137 = memref.load %arg2[%c21] : memref<98xf32, #tpu.memory_space<smem>>
      %138 = vector.broadcast %137 : f32 to vector<8x16xf32>
      %139 = arith.mulf %136, %138 : vector<8x16xf32>
      %140 = arith.addf %98, %139 : vector<8x16xf32>
      %141 = vector.extract_strided_slice %135 {offsets = [0, 1], sizes = [8, 16], strides = [1, 1]} : vector<8x22xf32> to vector<8x16xf32>
      %c22 = arith.constant 22 : index
      %142 = memref.load %arg2[%c22] : memref<98xf32, #tpu.memory_space<smem>>
      %143 = vector.broadcast %142 : f32 to vector<8x16xf32>
      %144 = arith.mulf %141, %143 : vector<8x16xf32>
      %145 = arith.addf %140, %144 : vector<8x16xf32>
      %146 = vector.extract_strided_slice %135 {offsets = [0, 2], sizes = [8, 16], strides = [1, 1]} : vector<8x22xf32> to vector<8x16xf32>
      %c23 = arith.constant 23 : index
      %147 = memref.load %arg2[%c23] : memref<98xf32, #tpu.memory_space<smem>>
      %148 = vector.broadcast %147 : f32 to vector<8x16xf32>
      %149 = arith.mulf %146, %148 : vector<8x16xf32>
      %150 = arith.addf %145, %149 : vector<8x16xf32>
      %151 = vector.extract_strided_slice %135 {offsets = [0, 3], sizes = [8, 16], strides = [1, 1]} : vector<8x22xf32> to vector<8x16xf32>
      %c24 = arith.constant 24 : index
      %152 = memref.load %arg2[%c24] : memref<98xf32, #tpu.memory_space<smem>>
      %153 = vector.broadcast %152 : f32 to vector<8x16xf32>
      %154 = arith.mulf %151, %153 : vector<8x16xf32>
      %155 = arith.addf %150, %154 : vector<8x16xf32>
      %156 = vector.extract_strided_slice %135 {offsets = [0, 4], sizes = [8, 16], strides = [1, 1]} : vector<8x22xf32> to vector<8x16xf32>
      %c25 = arith.constant 25 : index
      %157 = memref.load %arg2[%c25] : memref<98xf32, #tpu.memory_space<smem>>
      %158 = vector.broadcast %157 : f32 to vector<8x16xf32>
      %159 = arith.mulf %156, %158 : vector<8x16xf32>
      %160 = arith.addf %155, %159 : vector<8x16xf32>
      %161 = vector.extract_strided_slice %135 {offsets = [0, 5], sizes = [8, 16], strides = [1, 1]} : vector<8x22xf32> to vector<8x16xf32>
      %c26 = arith.constant 26 : index
      %162 = memref.load %arg2[%c26] : memref<98xf32, #tpu.memory_space<smem>>
      %163 = vector.broadcast %162 : f32 to vector<8x16xf32>
      %164 = arith.mulf %161, %163 : vector<8x16xf32>
      %165 = arith.addf %160, %164 : vector<8x16xf32>
      %166 = vector.extract_strided_slice %135 {offsets = [0, 6], sizes = [8, 16], strides = [1, 1]} : vector<8x22xf32> to vector<8x16xf32>
      %c27 = arith.constant 27 : index
      %167 = memref.load %arg2[%c27] : memref<98xf32, #tpu.memory_space<smem>>
      %168 = vector.broadcast %167 : f32 to vector<8x16xf32>
      %169 = arith.mulf %166, %168 : vector<8x16xf32>
      %170 = arith.addf %165, %169 : vector<8x16xf32>
      %171 = vector.extract_strided_slice %24 {offsets = [9, 0], sizes = [8, 22], strides = [1, 1]} : vector<24x22xf32> to vector<8x22xf32>
      %172 = vector.extract_strided_slice %171 {offsets = [0, 0], sizes = [8, 16], strides = [1, 1]} : vector<8x22xf32> to vector<8x16xf32>
      %c28 = arith.constant 28 : index
      %173 = memref.load %arg2[%c28] : memref<98xf32, #tpu.memory_space<smem>>
      %174 = vector.broadcast %173 : f32 to vector<8x16xf32>
      %175 = arith.mulf %172, %174 : vector<8x16xf32>
      %176 = arith.addf %134, %175 : vector<8x16xf32>
      %177 = vector.extract_strided_slice %171 {offsets = [0, 1], sizes = [8, 16], strides = [1, 1]} : vector<8x22xf32> to vector<8x16xf32>
      %c29 = arith.constant 29 : index
      %178 = memref.load %arg2[%c29] : memref<98xf32, #tpu.memory_space<smem>>
      %179 = vector.broadcast %178 : f32 to vector<8x16xf32>
      %180 = arith.mulf %177, %179 : vector<8x16xf32>
      %181 = arith.addf %176, %180 : vector<8x16xf32>
      %182 = vector.extract_strided_slice %171 {offsets = [0, 2], sizes = [8, 16], strides = [1, 1]} : vector<8x22xf32> to vector<8x16xf32>
      %c30 = arith.constant 30 : index
      %183 = memref.load %arg2[%c30] : memref<98xf32, #tpu.memory_space<smem>>
      %184 = vector.broadcast %183 : f32 to vector<8x16xf32>
      %185 = arith.mulf %182, %184 : vector<8x16xf32>
      %186 = arith.addf %181, %185 : vector<8x16xf32>
      %187 = vector.extract_strided_slice %171 {offsets = [0, 3], sizes = [8, 16], strides = [1, 1]} : vector<8x22xf32> to vector<8x16xf32>
      %c31 = arith.constant 31 : index
      %188 = memref.load %arg2[%c31] : memref<98xf32, #tpu.memory_space<smem>>
      %189 = vector.broadcast %188 : f32 to vector<8x16xf32>
      %190 = arith.mulf %187, %189 : vector<8x16xf32>
      %191 = arith.addf %186, %190 : vector<8x16xf32>
      %192 = vector.extract_strided_slice %171 {offsets = [0, 4], sizes = [8, 16], strides = [1, 1]} : vector<8x22xf32> to vector<8x16xf32>
      %c32 = arith.constant 32 : index
      %193 = memref.load %arg2[%c32] : memref<98xf32, #tpu.memory_space<smem>>
      %194 = vector.broadcast %193 : f32 to vector<8x16xf32>
      %195 = arith.mulf %192, %194 : vector<8x16xf32>
      %196 = arith.addf %191, %195 : vector<8x16xf32>
      %197 = vector.extract_strided_slice %171 {offsets = [0, 5], sizes = [8, 16], strides = [1, 1]} : vector<8x22xf32> to vector<8x16xf32>
      %c33 = arith.constant 33 : index
      %198 = memref.load %arg2[%c33] : memref<98xf32, #tpu.memory_space<smem>>
      %199 = vector.broadcast %198 : f32 to vector<8x16xf32>
      %200 = arith.mulf %197, %199 : vector<8x16xf32>
      %201 = arith.addf %196, %200 : vector<8x16xf32>
      %202 = vector.extract_strided_slice %171 {offsets = [0, 6], sizes = [8, 16], strides = [1, 1]} : vector<8x22xf32> to vector<8x16xf32>
      %c34 = arith.constant 34 : index
      %203 = memref.load %arg2[%c34] : memref<98xf32, #tpu.memory_space<smem>>
      %204 = vector.broadcast %203 : f32 to vector<8x16xf32>
      %205 = arith.mulf %202, %204 : vector<8x16xf32>
      %206 = arith.addf %201, %205 : vector<8x16xf32>
      %207 = vector.extract_strided_slice %24 {offsets = [10, 0], sizes = [8, 22], strides = [1, 1]} : vector<24x22xf32> to vector<8x22xf32>
      %208 = vector.extract_strided_slice %207 {offsets = [0, 0], sizes = [8, 16], strides = [1, 1]} : vector<8x22xf32> to vector<8x16xf32>
      %c35 = arith.constant 35 : index
      %209 = memref.load %arg2[%c35] : memref<98xf32, #tpu.memory_space<smem>>
      %210 = vector.broadcast %209 : f32 to vector<8x16xf32>
      %211 = arith.mulf %208, %210 : vector<8x16xf32>
      %212 = arith.addf %170, %211 : vector<8x16xf32>
      %213 = vector.extract_strided_slice %207 {offsets = [0, 1], sizes = [8, 16], strides = [1, 1]} : vector<8x22xf32> to vector<8x16xf32>
      %c36 = arith.constant 36 : index
      %214 = memref.load %arg2[%c36] : memref<98xf32, #tpu.memory_space<smem>>
      %215 = vector.broadcast %214 : f32 to vector<8x16xf32>
      %216 = arith.mulf %213, %215 : vector<8x16xf32>
      %217 = arith.addf %212, %216 : vector<8x16xf32>
      %218 = vector.extract_strided_slice %207 {offsets = [0, 2], sizes = [8, 16], strides = [1, 1]} : vector<8x22xf32> to vector<8x16xf32>
      %c37 = arith.constant 37 : index
      %219 = memref.load %arg2[%c37] : memref<98xf32, #tpu.memory_space<smem>>
      %220 = vector.broadcast %219 : f32 to vector<8x16xf32>
      %221 = arith.mulf %218, %220 : vector<8x16xf32>
      %222 = arith.addf %217, %221 : vector<8x16xf32>
      %223 = vector.extract_strided_slice %207 {offsets = [0, 3], sizes = [8, 16], strides = [1, 1]} : vector<8x22xf32> to vector<8x16xf32>
      %c38 = arith.constant 38 : index
      %224 = memref.load %arg2[%c38] : memref<98xf32, #tpu.memory_space<smem>>
      %225 = vector.broadcast %224 : f32 to vector<8x16xf32>
      %226 = arith.mulf %223, %225 : vector<8x16xf32>
      %227 = arith.addf %222, %226 : vector<8x16xf32>
      %228 = vector.extract_strided_slice %207 {offsets = [0, 4], sizes = [8, 16], strides = [1, 1]} : vector<8x22xf32> to vector<8x16xf32>
      %c39 = arith.constant 39 : index
      %229 = memref.load %arg2[%c39] : memref<98xf32, #tpu.memory_space<smem>>
      %230 = vector.broadcast %229 : f32 to vector<8x16xf32>
      %231 = arith.mulf %228, %230 : vector<8x16xf32>
      %232 = arith.addf %227, %231 : vector<8x16xf32>
      %233 = vector.extract_strided_slice %207 {offsets = [0, 5], sizes = [8, 16], strides = [1, 1]} : vector<8x22xf32> to vector<8x16xf32>
      %c40 = arith.constant 40 : index
      %234 = memref.load %arg2[%c40] : memref<98xf32, #tpu.memory_space<smem>>
      %235 = vector.broadcast %234 : f32 to vector<8x16xf32>
      %236 = arith.mulf %233, %235 : vector<8x16xf32>
      %237 = arith.addf %232, %236 : vector<8x16xf32>
      %238 = vector.extract_strided_slice %207 {offsets = [0, 6], sizes = [8, 16], strides = [1, 1]} : vector<8x22xf32> to vector<8x16xf32>
      %c41 = arith.constant 41 : index
      %239 = memref.load %arg2[%c41] : memref<98xf32, #tpu.memory_space<smem>>
      %240 = vector.broadcast %239 : f32 to vector<8x16xf32>
      %241 = arith.mulf %238, %240 : vector<8x16xf32>
      %242 = arith.addf %237, %241 : vector<8x16xf32>
      %243 = vector.extract_strided_slice %24 {offsets = [11, 0], sizes = [8, 22], strides = [1, 1]} : vector<24x22xf32> to vector<8x22xf32>
      %244 = vector.extract_strided_slice %243 {offsets = [0, 0], sizes = [8, 16], strides = [1, 1]} : vector<8x22xf32> to vector<8x16xf32>
      %c42 = arith.constant 42 : index
      %245 = memref.load %arg2[%c42] : memref<98xf32, #tpu.memory_space<smem>>
      %246 = vector.broadcast %245 : f32 to vector<8x16xf32>
      %247 = arith.mulf %244, %246 : vector<8x16xf32>
      %248 = arith.addf %206, %247 : vector<8x16xf32>
      %249 = vector.extract_strided_slice %243 {offsets = [0, 1], sizes = [8, 16], strides = [1, 1]} : vector<8x22xf32> to vector<8x16xf32>
      %c43 = arith.constant 43 : index
      %250 = memref.load %arg2[%c43] : memref<98xf32, #tpu.memory_space<smem>>
      %251 = vector.broadcast %250 : f32 to vector<8x16xf32>
      %252 = arith.mulf %249, %251 : vector<8x16xf32>
      %253 = arith.addf %248, %252 : vector<8x16xf32>
      %254 = vector.extract_strided_slice %243 {offsets = [0, 2], sizes = [8, 16], strides = [1, 1]} : vector<8x22xf32> to vector<8x16xf32>
      %c44 = arith.constant 44 : index
      %255 = memref.load %arg2[%c44] : memref<98xf32, #tpu.memory_space<smem>>
      %256 = vector.broadcast %255 : f32 to vector<8x16xf32>
      %257 = arith.mulf %254, %256 : vector<8x16xf32>
      %258 = arith.addf %253, %257 : vector<8x16xf32>
      %259 = vector.extract_strided_slice %243 {offsets = [0, 3], sizes = [8, 16], strides = [1, 1]} : vector<8x22xf32> to vector<8x16xf32>
      %c45 = arith.constant 45 : index
      %260 = memref.load %arg2[%c45] : memref<98xf32, #tpu.memory_space<smem>>
      %261 = vector.broadcast %260 : f32 to vector<8x16xf32>
      %262 = arith.mulf %259, %261 : vector<8x16xf32>
      %263 = arith.addf %258, %262 : vector<8x16xf32>
      %264 = vector.extract_strided_slice %243 {offsets = [0, 4], sizes = [8, 16], strides = [1, 1]} : vector<8x22xf32> to vector<8x16xf32>
      %c46 = arith.constant 46 : index
      %265 = memref.load %arg2[%c46] : memref<98xf32, #tpu.memory_space<smem>>
      %266 = vector.broadcast %265 : f32 to vector<8x16xf32>
      %267 = arith.mulf %264, %266 : vector<8x16xf32>
      %268 = arith.addf %263, %267 : vector<8x16xf32>
      %269 = vector.extract_strided_slice %243 {offsets = [0, 5], sizes = [8, 16], strides = [1, 1]} : vector<8x22xf32> to vector<8x16xf32>
      %c47 = arith.constant 47 : index
      %270 = memref.load %arg2[%c47] : memref<98xf32, #tpu.memory_space<smem>>
      %271 = vector.broadcast %270 : f32 to vector<8x16xf32>
      %272 = arith.mulf %269, %271 : vector<8x16xf32>
      %273 = arith.addf %268, %272 : vector<8x16xf32>
      %274 = vector.extract_strided_slice %243 {offsets = [0, 6], sizes = [8, 16], strides = [1, 1]} : vector<8x22xf32> to vector<8x16xf32>
      %c48 = arith.constant 48 : index
      %275 = memref.load %arg2[%c48] : memref<98xf32, #tpu.memory_space<smem>>
      %276 = vector.broadcast %275 : f32 to vector<8x16xf32>
      %277 = arith.mulf %274, %276 : vector<8x16xf32>
      %278 = arith.addf %273, %277 : vector<8x16xf32>
      %279 = arith.addf %278, %242 : vector<8x16xf32>
      %280 = arith.index_cast %22 : i32 to index
      %c0_12 = arith.constant 0 : index
      %281 = vector.load %arg7[%280, %c0_12] : memref<32x22xf32, #tpu.memory_space<vmem>>, vector<24x22xf32>
      %cst_13 = arith.constant 0.000000e+00 : f32
      %282 = vector.broadcast %cst_13 : f32 to vector<8x16xf32>
      %cst_14 = arith.constant 0.000000e+00 : f32
      %283 = vector.broadcast %cst_14 : f32 to vector<8x16xf32>
      %284 = vector.extract_strided_slice %281 {offsets = [5, 0], sizes = [8, 22], strides = [1, 1]} : vector<24x22xf32> to vector<8x22xf32>
      %285 = vector.extract_strided_slice %284 {offsets = [0, 0], sizes = [8, 16], strides = [1, 1]} : vector<8x22xf32> to vector<8x16xf32>
      %c49 = arith.constant 49 : index
      %286 = memref.load %arg2[%c49] : memref<98xf32, #tpu.memory_space<smem>>
      %287 = vector.broadcast %286 : f32 to vector<8x16xf32>
      %288 = arith.mulf %285, %287 : vector<8x16xf32>
      %289 = arith.addf %282, %288 : vector<8x16xf32>
      %290 = vector.extract_strided_slice %284 {offsets = [0, 1], sizes = [8, 16], strides = [1, 1]} : vector<8x22xf32> to vector<8x16xf32>
      %c50 = arith.constant 50 : index
      %291 = memref.load %arg2[%c50] : memref<98xf32, #tpu.memory_space<smem>>
      %292 = vector.broadcast %291 : f32 to vector<8x16xf32>
      %293 = arith.mulf %290, %292 : vector<8x16xf32>
      %294 = arith.addf %289, %293 : vector<8x16xf32>
      %295 = vector.extract_strided_slice %284 {offsets = [0, 2], sizes = [8, 16], strides = [1, 1]} : vector<8x22xf32> to vector<8x16xf32>
      %c51 = arith.constant 51 : index
      %296 = memref.load %arg2[%c51] : memref<98xf32, #tpu.memory_space<smem>>
      %297 = vector.broadcast %296 : f32 to vector<8x16xf32>
      %298 = arith.mulf %295, %297 : vector<8x16xf32>
      %299 = arith.addf %294, %298 : vector<8x16xf32>
      %300 = vector.extract_strided_slice %284 {offsets = [0, 3], sizes = [8, 16], strides = [1, 1]} : vector<8x22xf32> to vector<8x16xf32>
      %c52 = arith.constant 52 : index
      %301 = memref.load %arg2[%c52] : memref<98xf32, #tpu.memory_space<smem>>
      %302 = vector.broadcast %301 : f32 to vector<8x16xf32>
      %303 = arith.mulf %300, %302 : vector<8x16xf32>
      %304 = arith.addf %299, %303 : vector<8x16xf32>
      %305 = vector.extract_strided_slice %284 {offsets = [0, 4], sizes = [8, 16], strides = [1, 1]} : vector<8x22xf32> to vector<8x16xf32>
      %c53 = arith.constant 53 : index
      %306 = memref.load %arg2[%c53] : memref<98xf32, #tpu.memory_space<smem>>
      %307 = vector.broadcast %306 : f32 to vector<8x16xf32>
      %308 = arith.mulf %305, %307 : vector<8x16xf32>
      %309 = arith.addf %304, %308 : vector<8x16xf32>
      %310 = vector.extract_strided_slice %284 {offsets = [0, 5], sizes = [8, 16], strides = [1, 1]} : vector<8x22xf32> to vector<8x16xf32>
      %c54 = arith.constant 54 : index
      %311 = memref.load %arg2[%c54] : memref<98xf32, #tpu.memory_space<smem>>
      %312 = vector.broadcast %311 : f32 to vector<8x16xf32>
      %313 = arith.mulf %310, %312 : vector<8x16xf32>
      %314 = arith.addf %309, %313 : vector<8x16xf32>
      %315 = vector.extract_strided_slice %284 {offsets = [0, 6], sizes = [8, 16], strides = [1, 1]} : vector<8x22xf32> to vector<8x16xf32>
      %c55 = arith.constant 55 : index
      %316 = memref.load %arg2[%c55] : memref<98xf32, #tpu.memory_space<smem>>
      %317 = vector.broadcast %316 : f32 to vector<8x16xf32>
      %318 = arith.mulf %315, %317 : vector<8x16xf32>
      %319 = arith.addf %314, %318 : vector<8x16xf32>
      %320 = vector.extract_strided_slice %281 {offsets = [6, 0], sizes = [8, 22], strides = [1, 1]} : vector<24x22xf32> to vector<8x22xf32>
      %321 = vector.extract_strided_slice %320 {offsets = [0, 0], sizes = [8, 16], strides = [1, 1]} : vector<8x22xf32> to vector<8x16xf32>
      %c56 = arith.constant 56 : index
      %322 = memref.load %arg2[%c56] : memref<98xf32, #tpu.memory_space<smem>>
      %323 = vector.broadcast %322 : f32 to vector<8x16xf32>
      %324 = arith.mulf %321, %323 : vector<8x16xf32>
      %325 = arith.addf %283, %324 : vector<8x16xf32>
      %326 = vector.extract_strided_slice %320 {offsets = [0, 1], sizes = [8, 16], strides = [1, 1]} : vector<8x22xf32> to vector<8x16xf32>
      %c57 = arith.constant 57 : index
      %327 = memref.load %arg2[%c57] : memref<98xf32, #tpu.memory_space<smem>>
      %328 = vector.broadcast %327 : f32 to vector<8x16xf32>
      %329 = arith.mulf %326, %328 : vector<8x16xf32>
      %330 = arith.addf %325, %329 : vector<8x16xf32>
      %331 = vector.extract_strided_slice %320 {offsets = [0, 2], sizes = [8, 16], strides = [1, 1]} : vector<8x22xf32> to vector<8x16xf32>
      %c58 = arith.constant 58 : index
      %332 = memref.load %arg2[%c58] : memref<98xf32, #tpu.memory_space<smem>>
      %333 = vector.broadcast %332 : f32 to vector<8x16xf32>
      %334 = arith.mulf %331, %333 : vector<8x16xf32>
      %335 = arith.addf %330, %334 : vector<8x16xf32>
      %336 = vector.extract_strided_slice %320 {offsets = [0, 3], sizes = [8, 16], strides = [1, 1]} : vector<8x22xf32> to vector<8x16xf32>
      %c59 = arith.constant 59 : index
      %337 = memref.load %arg2[%c59] : memref<98xf32, #tpu.memory_space<smem>>
      %338 = vector.broadcast %337 : f32 to vector<8x16xf32>
      %339 = arith.mulf %336, %338 : vector<8x16xf32>
      %340 = arith.addf %335, %339 : vector<8x16xf32>
      %341 = vector.extract_strided_slice %320 {offsets = [0, 4], sizes = [8, 16], strides = [1, 1]} : vector<8x22xf32> to vector<8x16xf32>
      %c60 = arith.constant 60 : index
      %342 = memref.load %arg2[%c60] : memref<98xf32, #tpu.memory_space<smem>>
      %343 = vector.broadcast %342 : f32 to vector<8x16xf32>
      %344 = arith.mulf %341, %343 : vector<8x16xf32>
      %345 = arith.addf %340, %344 : vector<8x16xf32>
      %346 = vector.extract_strided_slice %320 {offsets = [0, 5], sizes = [8, 16], strides = [1, 1]} : vector<8x22xf32> to vector<8x16xf32>
      %c61 = arith.constant 61 : index
      %347 = memref.load %arg2[%c61] : memref<98xf32, #tpu.memory_space<smem>>
      %348 = vector.broadcast %347 : f32 to vector<8x16xf32>
      %349 = arith.mulf %346, %348 : vector<8x16xf32>
      %350 = arith.addf %345, %349 : vector<8x16xf32>
      %351 = vector.extract_strided_slice %320 {offsets = [0, 6], sizes = [8, 16], strides = [1, 1]} : vector<8x22xf32> to vector<8x16xf32>
      %c62 = arith.constant 62 : index
      %352 = memref.load %arg2[%c62] : memref<98xf32, #tpu.memory_space<smem>>
      %353 = vector.broadcast %352 : f32 to vector<8x16xf32>
      %354 = arith.mulf %351, %353 : vector<8x16xf32>
      %355 = arith.addf %350, %354 : vector<8x16xf32>
      %356 = vector.extract_strided_slice %281 {offsets = [7, 0], sizes = [8, 22], strides = [1, 1]} : vector<24x22xf32> to vector<8x22xf32>
      %357 = vector.extract_strided_slice %356 {offsets = [0, 0], sizes = [8, 16], strides = [1, 1]} : vector<8x22xf32> to vector<8x16xf32>
      %c63 = arith.constant 63 : index
      %358 = memref.load %arg2[%c63] : memref<98xf32, #tpu.memory_space<smem>>
      %359 = vector.broadcast %358 : f32 to vector<8x16xf32>
      %360 = arith.mulf %357, %359 : vector<8x16xf32>
      %361 = arith.addf %319, %360 : vector<8x16xf32>
      %362 = vector.extract_strided_slice %356 {offsets = [0, 1], sizes = [8, 16], strides = [1, 1]} : vector<8x22xf32> to vector<8x16xf32>
      %c64 = arith.constant 64 : index
      %363 = memref.load %arg2[%c64] : memref<98xf32, #tpu.memory_space<smem>>
      %364 = vector.broadcast %363 : f32 to vector<8x16xf32>
      %365 = arith.mulf %362, %364 : vector<8x16xf32>
      %366 = arith.addf %361, %365 : vector<8x16xf32>
      %367 = vector.extract_strided_slice %356 {offsets = [0, 2], sizes = [8, 16], strides = [1, 1]} : vector<8x22xf32> to vector<8x16xf32>
      %c65 = arith.constant 65 : index
      %368 = memref.load %arg2[%c65] : memref<98xf32, #tpu.memory_space<smem>>
      %369 = vector.broadcast %368 : f32 to vector<8x16xf32>
      %370 = arith.mulf %367, %369 : vector<8x16xf32>
      %371 = arith.addf %366, %370 : vector<8x16xf32>
      %372 = vector.extract_strided_slice %356 {offsets = [0, 3], sizes = [8, 16], strides = [1, 1]} : vector<8x22xf32> to vector<8x16xf32>
      %c66 = arith.constant 66 : index
      %373 = memref.load %arg2[%c66] : memref<98xf32, #tpu.memory_space<smem>>
      %374 = vector.broadcast %373 : f32 to vector<8x16xf32>
      %375 = arith.mulf %372, %374 : vector<8x16xf32>
      %376 = arith.addf %371, %375 : vector<8x16xf32>
      %377 = vector.extract_strided_slice %356 {offsets = [0, 4], sizes = [8, 16], strides = [1, 1]} : vector<8x22xf32> to vector<8x16xf32>
      %c67 = arith.constant 67 : index
      %378 = memref.load %arg2[%c67] : memref<98xf32, #tpu.memory_space<smem>>
      %379 = vector.broadcast %378 : f32 to vector<8x16xf32>
      %380 = arith.mulf %377, %379 : vector<8x16xf32>
      %381 = arith.addf %376, %380 : vector<8x16xf32>
      %382 = vector.extract_strided_slice %356 {offsets = [0, 5], sizes = [8, 16], strides = [1, 1]} : vector<8x22xf32> to vector<8x16xf32>
      %c68 = arith.constant 68 : index
      %383 = memref.load %arg2[%c68] : memref<98xf32, #tpu.memory_space<smem>>
      %384 = vector.broadcast %383 : f32 to vector<8x16xf32>
      %385 = arith.mulf %382, %384 : vector<8x16xf32>
      %386 = arith.addf %381, %385 : vector<8x16xf32>
      %387 = vector.extract_strided_slice %356 {offsets = [0, 6], sizes = [8, 16], strides = [1, 1]} : vector<8x22xf32> to vector<8x16xf32>
      %c69 = arith.constant 69 : index
      %388 = memref.load %arg2[%c69] : memref<98xf32, #tpu.memory_space<smem>>
      %389 = vector.broadcast %388 : f32 to vector<8x16xf32>
      %390 = arith.mulf %387, %389 : vector<8x16xf32>
      %391 = arith.addf %386, %390 : vector<8x16xf32>
      %392 = vector.extract_strided_slice %281 {offsets = [8, 0], sizes = [8, 22], strides = [1, 1]} : vector<24x22xf32> to vector<8x22xf32>
      %393 = vector.extract_strided_slice %392 {offsets = [0, 0], sizes = [8, 16], strides = [1, 1]} : vector<8x22xf32> to vector<8x16xf32>
      %c70 = arith.constant 70 : index
      %394 = memref.load %arg2[%c70] : memref<98xf32, #tpu.memory_space<smem>>
      %395 = vector.broadcast %394 : f32 to vector<8x16xf32>
      %396 = arith.mulf %393, %395 : vector<8x16xf32>
      %397 = arith.addf %355, %396 : vector<8x16xf32>
      %398 = vector.extract_strided_slice %392 {offsets = [0, 1], sizes = [8, 16], strides = [1, 1]} : vector<8x22xf32> to vector<8x16xf32>
      %c71 = arith.constant 71 : index
      %399 = memref.load %arg2[%c71] : memref<98xf32, #tpu.memory_space<smem>>
      %400 = vector.broadcast %399 : f32 to vector<8x16xf32>
      %401 = arith.mulf %398, %400 : vector<8x16xf32>
      %402 = arith.addf %397, %401 : vector<8x16xf32>
      %403 = vector.extract_strided_slice %392 {offsets = [0, 2], sizes = [8, 16], strides = [1, 1]} : vector<8x22xf32> to vector<8x16xf32>
      %c72 = arith.constant 72 : index
      %404 = memref.load %arg2[%c72] : memref<98xf32, #tpu.memory_space<smem>>
      %405 = vector.broadcast %404 : f32 to vector<8x16xf32>
      %406 = arith.mulf %403, %405 : vector<8x16xf32>
      %407 = arith.addf %402, %406 : vector<8x16xf32>
      %408 = vector.extract_strided_slice %392 {offsets = [0, 3], sizes = [8, 16], strides = [1, 1]} : vector<8x22xf32> to vector<8x16xf32>
      %c73 = arith.constant 73 : index
      %409 = memref.load %arg2[%c73] : memref<98xf32, #tpu.memory_space<smem>>
      %410 = vector.broadcast %409 : f32 to vector<8x16xf32>
      %411 = arith.mulf %408, %410 : vector<8x16xf32>
      %412 = arith.addf %407, %411 : vector<8x16xf32>
      %413 = vector.extract_strided_slice %392 {offsets = [0, 4], sizes = [8, 16], strides = [1, 1]} : vector<8x22xf32> to vector<8x16xf32>
      %c74 = arith.constant 74 : index
      %414 = memref.load %arg2[%c74] : memref<98xf32, #tpu.memory_space<smem>>
      %415 = vector.broadcast %414 : f32 to vector<8x16xf32>
      %416 = arith.mulf %413, %415 : vector<8x16xf32>
      %417 = arith.addf %412, %416 : vector<8x16xf32>
      %418 = vector.extract_strided_slice %392 {offsets = [0, 5], sizes = [8, 16], strides = [1, 1]} : vector<8x22xf32> to vector<8x16xf32>
      %c75 = arith.constant 75 : index
      %419 = memref.load %arg2[%c75] : memref<98xf32, #tpu.memory_space<smem>>
      %420 = vector.broadcast %419 : f32 to vector<8x16xf32>
      %421 = arith.mulf %418, %420 : vector<8x16xf32>
      %422 = arith.addf %417, %421 : vector<8x16xf32>
      %423 = vector.extract_strided_slice %392 {offsets = [0, 6], sizes = [8, 16], strides = [1, 1]} : vector<8x22xf32> to vector<8x16xf32>
      %c76 = arith.constant 76 : index
      %424 = memref.load %arg2[%c76] : memref<98xf32, #tpu.memory_space<smem>>
      %425 = vector.broadcast %424 : f32 to vector<8x16xf32>
      %426 = arith.mulf %423, %425 : vector<8x16xf32>
      %427 = arith.addf %422, %426 : vector<8x16xf32>
      %428 = vector.extract_strided_slice %281 {offsets = [9, 0], sizes = [8, 22], strides = [1, 1]} : vector<24x22xf32> to vector<8x22xf32>
      %429 = vector.extract_strided_slice %428 {offsets = [0, 0], sizes = [8, 16], strides = [1, 1]} : vector<8x22xf32> to vector<8x16xf32>
      %c77 = arith.constant 77 : index
      %430 = memref.load %arg2[%c77] : memref<98xf32, #tpu.memory_space<smem>>
      %431 = vector.broadcast %430 : f32 to vector<8x16xf32>
      %432 = arith.mulf %429, %431 : vector<8x16xf32>
      %433 = arith.addf %391, %432 : vector<8x16xf32>
      %434 = vector.extract_strided_slice %428 {offsets = [0, 1], sizes = [8, 16], strides = [1, 1]} : vector<8x22xf32> to vector<8x16xf32>
      %c78 = arith.constant 78 : index
      %435 = memref.load %arg2[%c78] : memref<98xf32, #tpu.memory_space<smem>>
      %436 = vector.broadcast %435 : f32 to vector<8x16xf32>
      %437 = arith.mulf %434, %436 : vector<8x16xf32>
      %438 = arith.addf %433, %437 : vector<8x16xf32>
      %439 = vector.extract_strided_slice %428 {offsets = [0, 2], sizes = [8, 16], strides = [1, 1]} : vector<8x22xf32> to vector<8x16xf32>
      %c79 = arith.constant 79 : index
      %440 = memref.load %arg2[%c79] : memref<98xf32, #tpu.memory_space<smem>>
      %441 = vector.broadcast %440 : f32 to vector<8x16xf32>
      %442 = arith.mulf %439, %441 : vector<8x16xf32>
      %443 = arith.addf %438, %442 : vector<8x16xf32>
      %444 = vector.extract_strided_slice %428 {offsets = [0, 3], sizes = [8, 16], strides = [1, 1]} : vector<8x22xf32> to vector<8x16xf32>
      %c80 = arith.constant 80 : index
      %445 = memref.load %arg2[%c80] : memref<98xf32, #tpu.memory_space<smem>>
      %446 = vector.broadcast %445 : f32 to vector<8x16xf32>
      %447 = arith.mulf %444, %446 : vector<8x16xf32>
      %448 = arith.addf %443, %447 : vector<8x16xf32>
      %449 = vector.extract_strided_slice %428 {offsets = [0, 4], sizes = [8, 16], strides = [1, 1]} : vector<8x22xf32> to vector<8x16xf32>
      %c81 = arith.constant 81 : index
      %450 = memref.load %arg2[%c81] : memref<98xf32, #tpu.memory_space<smem>>
      %451 = vector.broadcast %450 : f32 to vector<8x16xf32>
      %452 = arith.mulf %449, %451 : vector<8x16xf32>
      %453 = arith.addf %448, %452 : vector<8x16xf32>
      %454 = vector.extract_strided_slice %428 {offsets = [0, 5], sizes = [8, 16], strides = [1, 1]} : vector<8x22xf32> to vector<8x16xf32>
      %c82 = arith.constant 82 : index
      %455 = memref.load %arg2[%c82] : memref<98xf32, #tpu.memory_space<smem>>
      %456 = vector.broadcast %455 : f32 to vector<8x16xf32>
      %457 = arith.mulf %454, %456 : vector<8x16xf32>
      %458 = arith.addf %453, %457 : vector<8x16xf32>
      %459 = vector.extract_strided_slice %428 {offsets = [0, 6], sizes = [8, 16], strides = [1, 1]} : vector<8x22xf32> to vector<8x16xf32>
      %c83 = arith.constant 83 : index
      %460 = memref.load %arg2[%c83] : memref<98xf32, #tpu.memory_space<smem>>
      %461 = vector.broadcast %460 : f32 to vector<8x16xf32>
      %462 = arith.mulf %459, %461 : vector<8x16xf32>
      %463 = arith.addf %458, %462 : vector<8x16xf32>
      %464 = vector.extract_strided_slice %281 {offsets = [10, 0], sizes = [8, 22], strides = [1, 1]} : vector<24x22xf32> to vector<8x22xf32>
      %465 = vector.extract_strided_slice %464 {offsets = [0, 0], sizes = [8, 16], strides = [1, 1]} : vector<8x22xf32> to vector<8x16xf32>
      %c84 = arith.constant 84 : index
      %466 = memref.load %arg2[%c84] : memref<98xf32, #tpu.memory_space<smem>>
      %467 = vector.broadcast %466 : f32 to vector<8x16xf32>
      %468 = arith.mulf %465, %467 : vector<8x16xf32>
      %469 = arith.addf %427, %468 : vector<8x16xf32>
      %470 = vector.extract_strided_slice %464 {offsets = [0, 1], sizes = [8, 16], strides = [1, 1]} : vector<8x22xf32> to vector<8x16xf32>
      %c85 = arith.constant 85 : index
      %471 = memref.load %arg2[%c85] : memref<98xf32, #tpu.memory_space<smem>>
      %472 = vector.broadcast %471 : f32 to vector<8x16xf32>
      %473 = arith.mulf %470, %472 : vector<8x16xf32>
      %474 = arith.addf %469, %473 : vector<8x16xf32>
      %475 = vector.extract_strided_slice %464 {offsets = [0, 2], sizes = [8, 16], strides = [1, 1]} : vector<8x22xf32> to vector<8x16xf32>
      %c86 = arith.constant 86 : index
      %476 = memref.load %arg2[%c86] : memref<98xf32, #tpu.memory_space<smem>>
      %477 = vector.broadcast %476 : f32 to vector<8x16xf32>
      %478 = arith.mulf %475, %477 : vector<8x16xf32>
      %479 = arith.addf %474, %478 : vector<8x16xf32>
      %480 = vector.extract_strided_slice %464 {offsets = [0, 3], sizes = [8, 16], strides = [1, 1]} : vector<8x22xf32> to vector<8x16xf32>
      %c87 = arith.constant 87 : index
      %481 = memref.load %arg2[%c87] : memref<98xf32, #tpu.memory_space<smem>>
      %482 = vector.broadcast %481 : f32 to vector<8x16xf32>
      %483 = arith.mulf %480, %482 : vector<8x16xf32>
      %484 = arith.addf %479, %483 : vector<8x16xf32>
      %485 = vector.extract_strided_slice %464 {offsets = [0, 4], sizes = [8, 16], strides = [1, 1]} : vector<8x22xf32> to vector<8x16xf32>
      %c88 = arith.constant 88 : index
      %486 = memref.load %arg2[%c88] : memref<98xf32, #tpu.memory_space<smem>>
      %487 = vector.broadcast %486 : f32 to vector<8x16xf32>
      %488 = arith.mulf %485, %487 : vector<8x16xf32>
      %489 = arith.addf %484, %488 : vector<8x16xf32>
      %490 = vector.extract_strided_slice %464 {offsets = [0, 5], sizes = [8, 16], strides = [1, 1]} : vector<8x22xf32> to vector<8x16xf32>
      %c89 = arith.constant 89 : index
      %491 = memref.load %arg2[%c89] : memref<98xf32, #tpu.memory_space<smem>>
      %492 = vector.broadcast %491 : f32 to vector<8x16xf32>
      %493 = arith.mulf %490, %492 : vector<8x16xf32>
      %494 = arith.addf %489, %493 : vector<8x16xf32>
      %495 = vector.extract_strided_slice %464 {offsets = [0, 6], sizes = [8, 16], strides = [1, 1]} : vector<8x22xf32> to vector<8x16xf32>
      %c90 = arith.constant 90 : index
      %496 = memref.load %arg2[%c90] : memref<98xf32, #tpu.memory_space<smem>>
      %497 = vector.broadcast %496 : f32 to vector<8x16xf32>
      %498 = arith.mulf %495, %497 : vector<8x16xf32>
      %499 = arith.addf %494, %498 : vector<8x16xf32>
      %500 = vector.extract_strided_slice %281 {offsets = [11, 0], sizes = [8, 22], strides = [1, 1]} : vector<24x22xf32> to vector<8x22xf32>
      %501 = vector.extract_strided_slice %500 {offsets = [0, 0], sizes = [8, 16], strides = [1, 1]} : vector<8x22xf32> to vector<8x16xf32>
      %c91 = arith.constant 91 : index
      %502 = memref.load %arg2[%c91] : memref<98xf32, #tpu.memory_space<smem>>
      %503 = vector.broadcast %502 : f32 to vector<8x16xf32>
      %504 = arith.mulf %501, %503 : vector<8x16xf32>
      %505 = arith.addf %463, %504 : vector<8x16xf32>
      %506 = vector.extract_strided_slice %500 {offsets = [0, 1], sizes = [8, 16], strides = [1, 1]} : vector<8x22xf32> to vector<8x16xf32>
      %c92 = arith.constant 92 : index
      %507 = memref.load %arg2[%c92] : memref<98xf32, #tpu.memory_space<smem>>
      %508 = vector.broadcast %507 : f32 to vector<8x16xf32>
      %509 = arith.mulf %506, %508 : vector<8x16xf32>
      %510 = arith.addf %505, %509 : vector<8x16xf32>
      %511 = vector.extract_strided_slice %500 {offsets = [0, 2], sizes = [8, 16], strides = [1, 1]} : vector<8x22xf32> to vector<8x16xf32>
      %c93 = arith.constant 93 : index
      %512 = memref.load %arg2[%c93] : memref<98xf32, #tpu.memory_space<smem>>
      %513 = vector.broadcast %512 : f32 to vector<8x16xf32>
      %514 = arith.mulf %511, %513 : vector<8x16xf32>
      %515 = arith.addf %510, %514 : vector<8x16xf32>
      %516 = vector.extract_strided_slice %500 {offsets = [0, 3], sizes = [8, 16], strides = [1, 1]} : vector<8x22xf32> to vector<8x16xf32>
      %c94 = arith.constant 94 : index
      %517 = memref.load %arg2[%c94] : memref<98xf32, #tpu.memory_space<smem>>
      %518 = vector.broadcast %517 : f32 to vector<8x16xf32>
      %519 = arith.mulf %516, %518 : vector<8x16xf32>
      %520 = arith.addf %515, %519 : vector<8x16xf32>
      %521 = vector.extract_strided_slice %500 {offsets = [0, 4], sizes = [8, 16], strides = [1, 1]} : vector<8x22xf32> to vector<8x16xf32>
      %c95 = arith.constant 95 : index
      %522 = memref.load %arg2[%c95] : memref<98xf32, #tpu.memory_space<smem>>
      %523 = vector.broadcast %522 : f32 to vector<8x16xf32>
      %524 = arith.mulf %521, %523 : vector<8x16xf32>
      %525 = arith.addf %520, %524 : vector<8x16xf32>
      %526 = vector.extract_strided_slice %500 {offsets = [0, 5], sizes = [8, 16], strides = [1, 1]} : vector<8x22xf32> to vector<8x16xf32>
      %c96 = arith.constant 96 : index
      %527 = memref.load %arg2[%c96] : memref<98xf32, #tpu.memory_space<smem>>
      %528 = vector.broadcast %527 : f32 to vector<8x16xf32>
      %529 = arith.mulf %526, %528 : vector<8x16xf32>
      %530 = arith.addf %525, %529 : vector<8x16xf32>
      %531 = vector.extract_strided_slice %500 {offsets = [0, 6], sizes = [8, 16], strides = [1, 1]} : vector<8x22xf32> to vector<8x16xf32>
      %c97 = arith.constant 97 : index
      %532 = memref.load %arg2[%c97] : memref<98xf32, #tpu.memory_space<smem>>
      %533 = vector.broadcast %532 : f32 to vector<8x16xf32>
      %534 = arith.mulf %531, %533 : vector<8x16xf32>
      %535 = arith.addf %530, %534 : vector<8x16xf32>
      %536 = arith.addf %535, %499 : vector<8x16xf32>
      %537 = arith.addf %279, %536 : vector<8x16xf32>
      %c0_15 = arith.constant 0 : index
      %538 = memref.load %arg3[%c0_15] : memref<1xf32, #tpu.memory_space<smem>>
      %539 = vector.broadcast %538 : f32 to vector<8x16xf32>
      %540 = arith.addf %537, %539 : vector<8x16xf32>
      %541 = arith.negf %540 : vector<8x16xf32>
      %542 = math.exp %541 : vector<8x16xf32>
      %cst_16 = arith.constant 1.000000e+00 : f32
      %543 = vector.broadcast %cst_16 : f32 to vector<8x16xf32>
      %544 = arith.addf %543, %542 : vector<8x16xf32>
      %545 = arith.divf %543, %544 : vector<8x16xf32>
      %c0_i32_17 = arith.constant 0 : i32
      %c4_i32_18 = arith.constant 4 : i32
      %546 = arith.addi %c0_i32_17, %c4_i32_18 : i32
      %c1_i32_19 = arith.constant 1 : i32
      scf.for %arg9 = %c0_i32_17 to %546 step %c1_i32_19  : i32 {
        %547 = arith.addi %20, %arg9 : i32
        %548 = arith.index_cast %547 : i32 to index
        %c0_21 = arith.constant 0 : index
        %c0_22 = arith.constant 0 : index
        %549 = vector.load %arg8[%548, %c0_21, %c0_22] : memref<8x8x16xf32, #tpu.memory_space<vmem>>, vector<1x8x16xf32>
        %550 = vector.shape_cast %549 : vector<1x8x16xf32> to vector<8x16xf32>
        %551 = arith.mulf %550, %545 : vector<8x16xf32>
        %c0_23 = arith.constant 0 : index
        %552 = arith.index_cast %arg9 : i32 to index
        %c0_24 = arith.constant 0 : index
        %c0_25 = arith.constant 0 : index
        %553 = vector.load %arg5[%c0_23, %552, %c0_24, %c0_25] : memref<1x4x8x16xf32, #tpu.memory_space<vmem>>, vector<1x1x8x16xf32>
        %554 = vector.shape_cast %553 : vector<1x1x8x16xf32> to vector<8x16xf32>
        %555 = vector.shape_cast %551 : vector<8x16xf32> to vector<1x1x8x16xf32>
        tpu.vector_store %arg5[%c0_23, %552, %c0_24, %c0_25], %555 {strides = array<i32>} : memref<1x4x8x16xf32, #tpu.memory_space<vmem>>, vector<1x1x8x16xf32>,
      }
      %c4_i32_20 = arith.constant 4 : i32
    } else {
    }
    return
  }
  func.func @transform_0(%arg0: i32, %arg1: i32) -> i32 {
    %c0_i32 = arith.constant 0 : i32
    %c0_i32_0 = arith.constant 0 : i32
    return %c0_i32 : i32
  }
  func.func @transform_1(%arg0: i32, %arg1: i32) -> i32 {
    %c0_i32 = arith.constant 0 : i32
    %c0_i32_0 = arith.constant 0 : i32
    return %c0_i32 : i32
  }
  func.func @transform_2(%arg0: i32, %arg1: i32) -> (i32, i32, i32, i32) {
    %c1_i32 = arith.constant 1 : i32
    %0 = arith.minsi %arg1, %c1_i32 : i32
    %c0_i32 = arith.constant 0 : i32
    %c0_i32_0 = arith.constant 0 : i32
    %c0_i32_1 = arith.constant 0 : i32
    return %arg0, %c0_i32, %0, %c0_i32_0 : i32, i32, i32, i32
  }
  func.func @transform_3(%arg0: i32, %arg1: i32) -> (i32, i32, i32, i32) {
    %c1_i32 = arith.constant 1 : i32
    %0 = arith.subi %arg1, %c1_i32 : i32
    %c0_i32 = arith.constant 0 : i32
    %1 = arith.maxsi %0, %c0_i32 : i32
    %c0_i32_0 = arith.constant 0 : i32
    %c0_i32_1 = arith.constant 0 : i32
    %c0_i32_2 = arith.constant 0 : i32
    return %arg0, %c0_i32_0, %1, %c0_i32_1 : i32, i32, i32, i32
  }
}

</mosaic_0001>

<llo_original>
// kernel: spatial_gate_forward.1
$region0: #{spatial_gate_forward.1}
  #allocation0 [shape = 'u32[]', space=smem, size = 0x4, offset = 0x4, fixed_abs, tag = 'smem constant byte address 0x4 - core index']
  #allocation1 [shape = 'u32[144,128]{1,0:T(1,128)}', space=vmem, size = 0x12000, scoped, tag = 'internal scratch']
  #allocation2 [shape = 'f32[32,22]{1,0:T(8,128)}', space=vmem, size = 0x4000, scoped, tag = 'scratch operand']
  #allocation3 [shape = 'f32[32,22]{1,0:T(8,128)}', space=vmem, size = 0x4000, scoped, tag = 'scratch operand']
  #allocation4 [shape = 'f32[8,8,16]{2,1,0:T(8,128)}', space=vmem, size = 0x8000, scoped, tag = 'scratch operand']
  #allocation5 [shape = 'f32[1]{0:T(128)S(6)}', space=smem, size = 0x200, scoped, tag = 'scoped memory for spatial_gate_forward.1']
  %s0 = inlined_call_operand.vmem [shape: f32[98], index: 0, kind: input, shape index: {}]
  %s1 = inlined_call_operand.<no memory space> [shape: f32[1], index: 1, kind: input, shape index: {}]
  %s2 = inlined_call_operand.hbm [shape: f32[2,4,16,16], index: 2, kind: input, shape index: {}]
  %s3 = inlined_call_operand.hbm [shape: f32[2,4,16,16], index: 3, kind: output, shape index: {}]
  %s4 = sld [smem:[#allocation0]]
  $region79: #{spatial_gate_forward.1} parent=0
    _
  %s6 = ssub.s32 1, %s4
  %s7 = scalar_select 0, %s6, %s4
  %8 = sst [smem:[#allocation5]] %s1
  $region1: #{spatial_gate_forward.1} parent=0
    #allocation6 [shape = 'u8[512]{0}', space=smem, size = 0x200, scoped, tag = 'input window, operand 0, single buffered']
    #allocation7 [shape = 's32[2]{0}', space=sflag, size = 0x8, scoped, tag = 'scoped memory for spatial_gate_forward.1']
    #allocation8 [shape = 's32[2]{0}', space=sflag, size = 0x8, scoped, tag = 'scoped memory for spatial_gate_forward.1']
    #allocation9 [shape = 's32[2]{0}', space=sflag, size = 0x8, scoped, tag = 'scoped memory for spatial_gate_forward.1']
    #allocation10 [shape = 'u8[32768]{0}', space=vmem, size = 0x8000, scoped, tag = 'input window, operand 2']
    #allocation11 [shape = 'u8[32768]{0}', space=vmem, size = 0x8000, scoped, tag = 'output window, operand 0']
    %9 = vsyncpa [#allocation9], 0
    %10 = vsyncpa [#allocation7], 0
    %s11 = scalar_lea.sflag [#allocation7], 1
    %12 = vsyncpa %s11, 0
    %13 = vsyncpa [#allocation8], 0
    %s14 = scalar_lea.sflag [#allocation8], 1
    %15 = vsyncpa %s14, 0
    loop: start=0, step=1, limit=8
    $region2: #{spatial_gate_forward.1} parent=1 // loop_pre_header
      _
    $region3: #{spatial_gate_forward.1} parent=1 // loop_header
      %s17 = sphi 0, %s21
      %p18 = scmp.ge.s32.totalorder %s17, 8
      %s24 = sphi 0, %s36
      %s25 = sphi 0, %s32
      %s26 = sphi 0, %s24
      %s27 = sphi 0, %s25
      %s28 = sphi 0, %s26
      %s29 = sphi 0, %s27
      %s37 = sphi 0, %s37
      %s39 = sphi 0, %s37
      %s40 = sphi 0, %s39
      %s54 = sphi 0, %s40
      %s58 = sphi 0, %s58
      %s60 = sphi 0, %s58
      %s61 = sphi 0, %s60
      %s75 = sphi 0, %s61
      %s87 = sphi 0, %s89
      %s90 = sphi 0, %s87
      %s91 = sphi 0, %s90
      %s107 = sphi 0, %s91
      %s121 = sphi 0, %s123
      %s124 = sphi 0, %s121
      %s125 = sphi 0, %s124
      %s141 = sphi 0, %s125
    $region4: #{spatial_gate_forward.1} parent=1 // loop_header_branch
      %20 = sbr.rel (%p18) target = $region8
    $region5: #{spatial_gate_forward.1} parent=1 // loop_body
      %s22 = ssub.s32 %s17, 1
      %s23 = ssub.s32 %s17, 2
      %s30 = sadd.s32 1, %s25
      %p31 = scmp.ge.s32.totalorder %s30, 3
      %s32 = scalar_select %p31, 0, %s30
      %s33 = sadd.s32 1, %s24
      %s34 = scalar_select %p31, %s33, %s24
      %p35 = scmp.ge.s32.totalorder %s34, 2
      %s36 = scalar_select %p35, 0, %s34
      %s38 = sadd.s32 %s37, 1
      %p41 = scmp.eq.s32.totalorder %s17, 5
      %p42 = scmp.ne.s32.totalorder %s37, %s39
      %p43 = scmp.eq.s32.totalorder %s17, 0
      %p44 = por %p42, %p43
      %p45 = scmp.ne.s32.totalorder %s37, %s39
      %p46 = scmp.eq.s32.totalorder %s22, 5
      %p47 = por %p45, %p46
      %p48 = scmp.ne.s32.totalorder %s39, %s40
      %p49 = scmp.eq.s32.totalorder %s22, 0
      %p50 = por %p48, %p49
      %p51 = scmp.ne.s32.totalorder %s39, %s40
      %p52 = scmp.eq.s32.totalorder %s23, 5
      %p53 = por %p51, %p52
      %p55 = scmp.ne.s32.totalorder %s40, %s54
      %p56 = scmp.eq.s32.totalorder %s23, 0
      %p57 = por %p55, %p56
      %s59 = sadd.s32 %s58, 1
      %p62 = scmp.eq.s32.totalorder %s17, 5
      %p63 = scmp.ne.s32.totalorder %s58, %s60
      %p64 = scmp.eq.s32.totalorder %s17, 0
      %p65 = por %p63, %p64
      %p66 = scmp.ne.s32.totalorder %s58, %s60
      %p67 = scmp.eq.s32.totalorder %s22, 5
      %p68 = por %p66, %p67
      %p69 = scmp.ne.s32.totalorder %s60, %s61
      %p70 = scmp.eq.s32.totalorder %s22, 0
      %p71 = por %p69, %p70
      %p72 = scmp.ne.s32.totalorder %s60, %s61
      %p73 = scmp.eq.s32.totalorder %s23, 5
      %p74 = por %p72, %p73
      %p76 = scmp.ne.s32.totalorder %s61, %s75
      %p77 = scmp.eq.s32.totalorder %s23, 0
      %p78 = por %p76, %p77
      %p79 = scmp.lt.s32.totalorder %s25, 1
      %s80 = scalar_select %p79, %s25, 1
      %p81 = scmp.lt.s32.totalorder %s32, 1
      %s82 = scalar_select %p81, %s32, 1
      %s83 = ssub.s32 %s24, %s36
      %s84 = ssub.s32 %s80, %s82
      %s85 = sor.u32 %s83, %s84
      %p86 = scmp.eq.s32.totalorder %s85, 0
      %s88 = sadd.s32 %s87, 1
      %s89 = scalar_select %p86, %s87, %s88
      %p92 = pneg %p86
      %p93 = scmp.eq.s32.totalorder %s17, 5
      %p94 = por %p92, %p93
      %p95 = scmp.ne.s32.totalorder %s87, %s90
      %p96 = scmp.eq.s32.totalorder %s17, 0
      %p97 = por %p95, %p96
      %p98 = scmp.ne.s32.totalorder %s87, %s90
      %p99 = scmp.eq.s32.totalorder %s22, 5
      %p100 = por %p98, %p99
      %p101 = scmp.ne.s32.totalorder %s90, %s91
      %p102 = scmp.eq.s32.totalorder %s22, 0
      %p103 = por %p101, %p102
      %p104 = scmp.ne.s32.totalorder %s90, %s91
      %p105 = scmp.eq.s32.totalorder %s23, 5
      %p106 = por %p104, %p105
      %p108 = scmp.ne.s32.totalorder %s91, %s107
      %p109 = scmp.eq.s32.totalorder %s23, 0
      %p110 = por %p108, %p109
      %s111 = ssub.s32 %s25, 1
      %p112 = scmp.gt.s32.totalorder %s111, 0
      %s113 = scalar_select %p112, %s111, 0
      %s114 = ssub.s32 %s32, 1
      %p115 = scmp.gt.s32.totalorder %s114, 0
      %s116 = scalar_select %p115, %s114, 0
      %s117 = ssub.s32 %s24, %s36
      %s118 = ssub.s32 %s113, %s116
      %s119 = sor.u32 %s117, %s118
      %p120 = scmp.eq.s32.totalorder %s119, 0
      %s122 = sadd.s32 %s121, 1
      %s123 = scalar_select %p120, %s121, %s122
      %p126 = pneg %p120
      %p127 = scmp.eq.s32.totalorder %s17, 5
      %p128 = por %p126, %p127
      %p129 = scmp.ne.s32.totalorder %s121, %s124
      %p130 = scmp.eq.s32.totalorder %s17, 0
      %p131 = por %p129, %p130
      %p132 = scmp.ne.s32.totalorder %s121, %s124
      %p133 = scmp.eq.s32.totalorder %s22, 5
      %p134 = por %p132, %p133
      %p135 = scmp.ne.s32.totalorder %s124, %s125
      %p136 = scmp.eq.s32.totalorder %s22, 0
      %p137 = por %p135, %p136
      %p138 = scmp.ne.s32.totalorder %s124, %s125
      %p139 = scmp.eq.s32.totalorder %s23, 5
      %p140 = por %p138, %p139
      %p142 = scmp.ne.s32.totalorder %s125, %s141
      %p143 = scmp.eq.s32.totalorder %s23, 0
      %p144 = por %p142, %p143
      %p145 = scmp.le.s32.totalorder 1, %s17
      %p146 = scmp.lt.s32.totalorder %s17, 7
      %p147 = pnand %p145, %p146
      %p148 = pneg %p147
      // Predicated region
      $region9: #{spatial_gate_forward.1} parent=5 // pred_check
        _
      $region10: #{spatial_gate_forward.1} parent=5 // pred_check_branch
        %150 = sbr.rel (%p147) target = $region12
      $region11: #{spatial_gate_forward.1} parent=5 // pred_region
        %s151 = ssub.s32 %s17, 1
        // Predicated region
        $region13: #{spatial_gate_forward.1} parent=11 // pred_check
          %p152 = pneg %p50
        $region14: #{spatial_gate_forward.1} parent=11 // pred_check_branch
          %154 = sbr.rel (%p152) target = $region16
        $region15: #{spatial_gate_forward.1} parent=11 // pred_region
          %s156 = ssub.s32 16, 16
          %157 = vsyncadd [#allocation9], %s156
          %s159 = sshll.u32 %s0, 4
          %s160 = int_to_ptr.vmem [resolvable:$true] %s159
          %162 = dma.vmem_to_smem %s160, 16, [#allocation6], [#allocation9]
        $region16: #{spatial_gate_forward.1} parent=11 // pred_fallthru
          _
        // Predicated region
        $region17: #{spatial_gate_forward.1} parent=11 // pred_check
          %p163 = pneg %p71
        $region18: #{spatial_gate_forward.1} parent=11 // pred_check_branch
          %165 = sbr.rel (%p163) target = $region20
        $region19: #{spatial_gate_forward.1} parent=11 // pred_region
          _
        $region20: #{spatial_gate_forward.1} parent=11 // pred_fallthru
          _
      $region12: #{spatial_gate_forward.1} parent=5 // pred_fallthru
        _
      %p166 = scmp.lt.s32.totalorder %s17, 6
      // Predicated region
      $region21: #{spatial_gate_forward.1} parent=5 // pred_check
        %p167 = pneg %p166
      $region22: #{spatial_gate_forward.1} parent=5 // pred_check_branch
        %169 = sbr.rel (%p167) target = $region24
      $region23: #{spatial_gate_forward.1} parent=5 // pred_region
        // Predicated region
        $region25: #{spatial_gate_forward.1} parent=23 // pred_check
          %p170 = pneg %p97
        $region26: #{spatial_gate_forward.1} parent=23 // pred_check_branch
          %172 = sbr.rel (%p170) target = $region28
        $region27: #{spatial_gate_forward.1} parent=23 // pred_region
          %s173 = sand.u32 %s87, 1
          %s174 = scalar_lea.sflag [#allocation7], %s173
          %s175 = sand.u32 %s87, 1
          %s176 = smul.addr %s175, 32
          %s177 = scalar_lea.vmem [#allocation10], %s176
          %p178 = scmp.lt.s32.totalorder %s25, 1
          %s179 = scalar_select %p178, %s25, 1
          %s181 = ssub.s32 512, 512
          %182 = vsyncadd %s174, %s181
          %s183 = smul.addr %s24, 8
          %s184 = sadd.s32 %s179, %s183
          %s185 = smul.addr %s184, 128
          %s186 = scalar_lea.hbm %s2, %s185
          %s187 = sshll.u32 %s177, 4
          %s188 = int_to_ptr.vmem [resolvable:$true] %s187
          %193 = dma.hbm_to_vmem [thread:$0]  %s186, 512, %s188, %s174, 256, 128, 8
        $region28: #{spatial_gate_forward.1} parent=23 // pred_fallthru
          _
      $region24: #{spatial_gate_forward.1} parent=5 // pred_fallthru
        _
      %p194 = scmp.le.s32.totalorder 1, %s17
      %p195 = scmp.lt.s32.totalorder %s17, 7
      %p196 = pnand %p194, %p195
      %p197 = pneg %p196
      // Predicated region
      $region29: #{spatial_gate_forward.1} parent=5 // pred_check
        _
      $region30: #{spatial_gate_forward.1} parent=5 // pred_check_branch
        %199 = sbr.rel (%p196) target = $region32
      $region31: #{spatial_gate_forward.1} parent=5 // pred_region
        %s200 = ssub.s32 %s17, 1
        // Predicated region
        $region33: #{spatial_gate_forward.1} parent=31 // pred_check
          %p201 = pneg %p50
        $region34: #{spatial_gate_forward.1} parent=31 // pred_check_branch
          %203 = sbr.rel (%p201) target = $region36
        $region35: #{spatial_gate_forward.1} parent=31 // pred_region
          %204 = dma.done [#allocation9], 16
        $region36: #{spatial_gate_forward.1} parent=31 // pred_fallthru
          _
        %s205 = sand.u32 %s90, 1
        %s206 = scalar_lea.sflag [#allocation7], %s205
        %s207 = sand.u32 %s90, 1
        %s208 = smul.addr %s207, 32
        %s209 = scalar_lea.vmem [#allocation10], %s208
        // Predicated region
        $region37: #{spatial_gate_forward.1} parent=31 // pred_check
          %p210 = pneg %p103
        $region38: #{spatial_gate_forward.1} parent=31 // pred_check_branch
          %212 = sbr.rel (%p210) target = $region40
        $region39: #{spatial_gate_forward.1} parent=31 // pred_region
          %213 = dma.done %s206, 512
        $region40: #{spatial_gate_forward.1} parent=31 // pred_fallthru
          _
        %214 = sfence
        %p215 = pneg %p50
        %p216 = pneg %p47
        %p217 = pneg %p71
        %p218 = pneg %p68
        %s219 = sand.u32 %s90, 1
        %s220 = scalar_lea.sflag [#allocation7], %s219
        %s221 = sand.u32 %s90, 1
        %s222 = smul.addr %s221, 32
        %s223 = scalar_lea.vmem [#allocation10], %s222
        %p224 = pneg %p103
        %p225 = pneg %p100
        %p226 = pneg %p137
        %p227 = pneg %p134
        %s228 = sand.u32 %s124, 1
        %s229 = scalar_lea.sflag [#allocation8], %s228
        %s230 = sand.u32 %s124, 1
        %s231 = smul.addr %s230, 32
        %s232 = scalar_lea.vmem [#allocation11], %s231
        %p233 = scmp.lt.s32.totalorder %s27, 1
        %s234 = scalar_select %p233, %s27, 1
        %s235 = ssub.s32 %s27, 1
        %p236 = scmp.gt.s32.totalorder %s235, 0
        %s237 = scalar_select %p236, %s235, 0
        %p238 = scmp.eq.s32.totalorder %s27, 0
        // Predicated region
        $region41: #{spatial_gate_forward.1} parent=31 // pred_check
          %p239 = pneg %p238
        $region42: #{spatial_gate_forward.1} parent=31 // pred_check_branch
          %241 = sbr.rel (%p239) target = $region44
        $region43: #{spatial_gate_forward.1} parent=31 // pred_region
          %vm242 = vcmask 179200
          %243 = vst.msk [vmem:[#allocation2] sm:$0xff] %vm242, 0.0
          %244 = vst.msk [vmem:[#allocation2 + $0x18] sm:$0xff] %vm242, 0.0
          %vm245 = vcmask 23552
          %246 = vst.msk [vmem:[#allocation2 + $0x8] sm:$0xff] %vm245, 0.0
          %247 = vst.msk [vmem:[#allocation2 + $0x10] sm:$0xff] %vm245, 0.0
          %vm248 = vcmask 179352
          %249 = vst.msk [vmem:[#allocation2 + $0x8] sm:$0xff] %vm248, 0.0
          %250 = vst.msk [vmem:[#allocation2 + $0x10] sm:$0xff] %vm248, 0.0
          %251 = vst.msk [vmem:[#allocation3] sm:$0xff] %vm242, 0.0
          %252 = vst.msk [vmem:[#allocation3 + $0x18] sm:$0xff] %vm242, 0.0
          %253 = vst.msk [vmem:[#allocation3 + $0x8] sm:$0xff] %vm245, 0.0
          %254 = vst.msk [vmem:[#allocation3 + $0x10] sm:$0xff] %vm245, 0.0
          %255 = vst.msk [vmem:[#allocation3 + $0x8] sm:$0xff] %vm248, 0.0
          %256 = vst.msk [vmem:[#allocation3 + $0x10] sm:$0xff] %vm248, 0.0
        $region44: #{spatial_gate_forward.1} parent=31 // pred_fallthru
          _
        %p257 = scmp.lt.s32.totalorder %s27, 2
        // Predicated region
        $region45: #{spatial_gate_forward.1} parent=31 // pred_check
          %p258 = pneg %p257
        $region46: #{spatial_gate_forward.1} parent=31 // pred_check_branch
          %260 = sbr.rel (%p258) target = $region48
        $region47: #{spatial_gate_forward.1} parent=31 // pred_region
          %p261 = scmp.lt.s32.totalorder %s27, 0
          %s262 = ssub.s32 0, %s27
          %s263 = scalar_select %p261, %s262, %s27
          %s264 = sand.u32 %s263, 1
          %s265 = ssub.s32 0, %s264
          %s266 = scalar_select %p261, %s265, %s264
          %p267 = scmp.ne.s32.totalorder %s266, 0
          %p268 = scmp.lt.s32.totalorder %s266, 0
          %p269 = pnand %p268, %p267
          %p270 = pneg %p269
          %s271 = sadd.s32 %s266, 2
          %s272 = scalar_select %p270, %s271, %s266
          %s273 = smul.u32 %s272, 4
          loop: start=0, step=1, limit=4
          $region49: #{spatial_gate_forward.1} parent=47 // loop_pre_header
            _
          $region50: #{spatial_gate_forward.1} parent=47 // loop_header
            %s275 = sphi 0, %s279
            %p276 = scmp.ge.s32.totalorder %s275, 4
            %v280 = vphi -inf, %v290
            %v281 = vphi 0.0, %v291
          $region51: #{spatial_gate_forward.1} parent=47 // loop_header_branch
            %278 = sbr.rel (%p276) target = $region55
          $region52: #{spatial_gate_forward.1} parent=47 // loop_body
            %s282 = smul.u32 %s275, 8
            %s283 = scalar_lea.vmem %s209, %s282 [#allocation10]
            %v284 = vld [vmem:[%s283] sm:$0xff]
            %s285 = sadd.s32 %s273, %s275
            %s286 = smul.u32 %s285, 8
            %s287 = scalar_lea.vmem [#allocation4], %s286
            %vm288 = vcmask 130048
            %289 = vst.msk [vmem:[%s287] sm:$0xff] %vm288, %v284
            %v290 = vmax.f32 %v280, %v284
            %v291 = vadd.f32 %v281, %v284
          $region53: #{spatial_gate_forward.1} parent=47 // loop_footer
            %s279 = sadd.s32 1, %s275
          $region54: #{spatial_gate_forward.1} parent=47 // loop_footer_branch
            %274 = sbr.rel target = $region50
          $region55: #{spatial_gate_forward.1} parent=47 // loop_exit
            _
          %s292 = smul.u32 %s27, 8
          %s293 = sadd.s32 %s292, 8
          %295 = vrot.lane.b32.xlu0 %v280, 3
          %v296 = vpop.permute.xlu0 %295
          %s298 = scalar_lea.vmem [#allocation2], %s293
          %vm299 = vcmask 154648
          %300 = vst.msk [vmem:[%s298] sm:$0xff] %vm299, %v296
          %v301 = vmul.f32 %v281, 0.25
          %303 = vrot.lane.b32.xlu0 %v301, 3
          %v304 = vpop.permute.xlu0 %303
          %s306 = scalar_lea.vmem [#allocation3], %s293
          %307 = vst.msk [vmem:[%s306] sm:$0xff] %vm299, %v304
        $region48: #{spatial_gate_forward.1} parent=31 // pred_fallthru
          _
        %p308 = scmp.gt.s32.totalorder %s27, 0
        // Predicated region
        $region56: #{spatial_gate_forward.1} parent=31 // pred_check
          %p309 = pneg %p308
        $region57: #{spatial_gate_forward.1} parent=31 // pred_check_branch
          %311 = sbr.rel (%p309) target = $region59
        $region58: #{spatial_gate_forward.1} parent=31 // pred_region
          %s312 = ssub.s32 %s27, 1
          %p313 = scmp.lt.s32.totalorder %s312, 0
          %s314 = ssub.s32 0, %s312
          %s315 = scalar_select %p313, %s314, %s312
          %s316 = sand.u32 %s315, 1
          %s317 = ssub.s32 0, %s316
          %s318 = scalar_select %p313, %s317, %s316
          %p319 = scmp.ne.s32.totalorder %s318, 0
          %p320 = scmp.lt.s32.totalorder %s318, 0
          %p321 = pnand %p320, %p319
          %p322 = pneg %p321
          %s323 = sadd.s32 %s318, 2
          %s324 = scalar_select %p322, %s323, %s318
          %s325 = smul.u32 %s324, 4
          %s326 = smul.u32 %s312, 8
          %s327 = scalar_lea.vmem [#allocation2], %s326
          %v328 = vld [vmem:[%s327] sm:$0xff]
          %v329 = vld [vmem:[%s327 + $0x8] sm:$0xff]
          %v330 = vld [vmem:[%s327 + $0x10] sm:$0xff]
          %s331 = sld [smem:[#allocation6]]
          %v332 = vstv %s331
          %v333 = vmul.f32 %v328, %v332
          %v334 = vmul.f32 %v329, %v332
          %v335 = vadd.f32 %v333, 0.0
          %v336 = vadd.f32 %v334, 0.0
          %s337 = sld [smem:[#allocation6 + $0x1]]
          %v338 = vstv %s337
          %v339 = vmul.f32 %v328, %v338
          %v340 = vmul.f32 %v329, %v338
          %343 = vrot.lane.b32.xlu0 %v339, 127
          %v344 = vpop.permute.xlu0 %343
          %345 = vrot.lane.b32.xlu0 %v340, 127
          %v346 = vpop.permute.xlu0 %345
          %v349 = vadd.f32 %v335, %v344
          %v350 = vadd.f32 %v336, %v346
          %s351 = sld [smem:[#allocation6 + $0x2]]
          %v352 = vstv %s351
          %v353 = vmul.f32 %v328, %v352
          %v354 = vmul.f32 %v329, %v352
          %357 = vrot.lane.b32.xlu0 %v353, 126
          %v358 = vpop.permute.xlu0 %357
          %359 = vrot.lane.b32.xlu0 %v354, 126
          %v360 = vpop.permute.xlu0 %359
          %v363 = vadd.f32 %v349, %v358
          %v364 = vadd.f32 %v350, %v360
          %s365 = sld [smem:[#allocation6 + $0x3]]
          %v366 = vstv %s365
          %v367 = vmul.f32 %v328, %v366
          %v368 = vmul.f32 %v329, %v366
          %371 = vrot.lane.b32.xlu0 %v367, 125
          %v372 = vpop.permute.xlu0 %371
          %373 = vrot.lane.b32.xlu0 %v368, 125
          %v374 = vpop.permute.xlu0 %373
          %v377 = vadd.f32 %v363, %v372
          %v378 = vadd.f32 %v364, %v374
          %s379 = sld [smem:[#allocation6 + $0x4]]
          %v380 = vstv %s379
          %v381 = vmul.f32 %v328, %v380
          %v382 = vmul.f32 %v329, %v380
          %385 = vrot.lane.b32.xlu0 %v381, 124
          %v386 = vpop.permute.xlu0 %385
          %387 = vrot.lane.b32.xlu0 %v382, 124
          %v388 = vpop.permute.xlu0 %387
          %v391 = vadd.f32 %v377, %v386
          %v392 = vadd.f32 %v378, %v388
          %s393 = sld [smem:[#allocation6 + $0x5]]
          %v394 = vstv %s393
          %v395 = vmul.f32 %v328, %v394
          %v396 = vmul.f32 %v329, %v394
          %399 = vrot.lane.b32.xlu0 %v395, 123
          %v400 = vpop.permute.xlu0 %399
          %401 = vrot.lane.b32.xlu0 %v396, 123
          %v402 = vpop.permute.xlu0 %401
          %v405 = vadd.f32 %v391, %v400
          %v406 = vadd.f32 %v392, %v402
          %s407 = sld [smem:[#allocation6 + $0x6]]
          %v408 = vstv %s407
          %v409 = vmul.f32 %v328, %v408
          %v410 = vmul.f32 %v329, %v408
          %413 = vrot.lane.b32.xlu0 %v409, 122
          %v414 = vpop.permute.xlu0 %413
          %415 = vrot.lane.b32.xlu0 %v410, 122
          %v416 = vpop.permute.xlu0 %415
          %v419 = vadd.f32 %v405, %v414
          %v420 = vadd.f32 %v406, %v416
          %s421 = sld [smem:[#allocation6 + $0x7]]
          %v422 = vstv %s421
          %v423 = vmul.f32 %v328, %v422
          %v424 = vmul.f32 %v329, %v422
          %v425 = vadd.f32 %v423, 0.0
          %v426 = vadd.f32 %v424, 0.0
          %s427 = sld [smem:[#allocation6 + $0x8]]
          %v428 = vstv %s427
          %v429 = vmul.f32 %v328, %v428
          %v430 = vmul.f32 %v329, %v428
          %433 = vrot.lane.b32.xlu0 %v429, 127
          %v434 = vpop.permute.xlu0 %433
          %435 = vrot.lane.b32.xlu0 %v430, 127
          %v436 = vpop.permute.xlu0 %435
          %v439 = vadd.f32 %v425, %v434
          %v440 = vadd.f32 %v426, %v436
          %s441 = sld [smem:[#allocation6 + $0x9]]
          %v442 = vstv %s441
          %v443 = vmul.f32 %v328, %v442
          %v444 = vmul.f32 %v329, %v442
          %447 = vrot.lane.b32.xlu0 %v443, 126
          %v448 = vpop.permute.xlu0 %447
          %449 = vrot.lane.b32.xlu0 %v444, 126
          %v450 = vpop.permute.xlu0 %449
          %v453 = vadd.f32 %v439, %v448
          %v454 = vadd.f32 %v440, %v450
          %s455 = sld [smem:[#allocation6 + $0xa]]
          %v456 = vstv %s455
          %v457 = vmul.f32 %v328, %v456
          %v458 = vmul.f32 %v329, %v456
          %461 = vrot.lane.b32.xlu0 %v457, 125
          %v462 = vpop.permute.xlu0 %461
          %463 = vrot.lane.b32.xlu0 %v458, 125
          %v464 = vpop.permute.xlu0 %463
          %v467 = vadd.f32 %v453, %v462
          %v468 = vadd.f32 %v454, %v464
          %s469 = sld [smem:[#allocation6 + $0xb]]
          %v470 = vstv %s469
          %v471 = vmul.f32 %v328, %v470
          %v472 = vmul.f32 %v329, %v470
          %475 = vrot.lane.b32.xlu0 %v471, 124
          %v476 = vpop.permute.xlu0 %475
          %477 = vrot.lane.b32.xlu0 %v472, 124
          %v478 = vpop.permute.xlu0 %477
          %v481 = vadd.f32 %v467, %v476
          %v482 = vadd.f32 %v468, %v478
          %s483 = sld [smem:[#allocation6 + $0xc]]
          %v484 = vstv %s483
          %v485 = vmul.f32 %v328, %v484
          %v486 = vmul.f32 %v329, %v484
          %489 = vrot.lane.b32.xlu0 %v485, 123
          %v490 = vpop.permute.xlu0 %489
          %491 = vrot.lane.b32.xlu0 %v486, 123
          %v492 = vpop.permute.xlu0 %491
          %v495 = vadd.f32 %v481, %v490
          %v496 = vadd.f32 %v482, %v492
          %s497 = sld [smem:[#allocation6 + $0xd]]
          %v498 = vstv %s497
          %v499 = vmul.f32 %v328, %v498
          %v500 = vmul.f32 %v329, %v498
          %503 = vrot.lane.b32.xlu0 %v499, 122
          %v504 = vpop.permute.xlu0 %503
          %505 = vrot.lane.b32.xlu0 %v500, 122
          %v506 = vpop.permute.xlu0 %505
          %v509 = vadd.f32 %v495, %v504
          %v510 = vadd.f32 %v496, %v506
          %s511 = sld [smem:[#allocation6 + $0xe]]
          %v512 = vstv %s511
          %v513 = vmul.f32 %v328, %v512
          %v514 = vmul.f32 %v329, %v512
          %vm517 = vcmask 1045504
          %v518 = vrot.slane %v513, 2
          %v519 = vrot.slane %v514, 2
          %v520 = vsel %vm517, %v518, %v519
          %v523 = vadd.f32 %v419, %v520
          %v524 = vadd.f32 %v420, %v519
          %s525 = sld [smem:[#allocation6 + $0xf]]
          %v526 = vstv %s525
          %v527 = vmul.f32 %v328, %v526
          %v528 = vmul.f32 %v329, %v526
          %v531 = vrot.slane %v527, 2
          %v532 = vrot.slane %v528, 2
          %v533 = vsel %vm517, %v531, %v532
          %534 = vrot.lane.b32.xlu0 %v533, 127
          %v535 = vpop.permute.xlu0 %534
          %536 = vrot.lane.b32.xlu0 %v532, 127
          %v537 = vpop.permute.xlu0 %536
          %v540 = vadd.f32 %v523, %v535
          %v541 = vadd.f32 %v524, %v537
          %s542 = sld [smem:[#allocation6 + $0x10]]
          %v543 = vstv %s542
          %v544 = vmul.f32 %v328, %v543
          %v545 = vmul.f32 %v329, %v543
          %v548 = vrot.slane %v544, 2
          %v549 = vrot.slane %v545, 2
          %v550 = vsel %vm517, %v548, %v549
          %551 = vrot.lane.b32.xlu0 %v550, 126
          %v552 = vpop.permute.xlu0 %551
          %553 = vrot.lane.b32.xlu0 %v549, 126
          %v554 = vpop.permute.xlu0 %553
          %v557 = vadd.f32 %v540, %v552
          %v558 = vadd.f32 %v541, %v554
          %s559 = sld [smem:[#allocation6 + $0x11]]
          %v560 = vstv %s559
          %v561 = vmul.f32 %v328, %v560
          %v562 = vmul.f32 %v329, %v560
          %v565 = vrot.slane %v561, 2
          %v566 = vrot.slane %v562, 2
          %v567 = vsel %vm517, %v565, %v566
          %568 = vrot.lane.b32.xlu0 %v567, 125
          %v569 = vpop.permute.xlu0 %568
          %570 = vrot.lane.b32.xlu0 %v566, 125
          %v571 = vpop.permute.xlu0 %570
          %v574 = vadd.f32 %v557, %v569
          %v575 = vadd.f32 %v558, %v571
          %s576 = sld [smem:[#allocation6 + $0x12]]
          %v577 = vstv %s576
          %v578 = vmul.f32 %v328, %v577
          %v579 = vmul.f32 %v329, %v577
          %v582 = vrot.slane %v578, 2
          %v583 = vrot.slane %v579, 2
          %v584 = vsel %vm517, %v582, %v583
          %585 = vrot.lane.b32.xlu0 %v584, 124
          %v586 = vpop.permute.xlu0 %585
          %587 = vrot.lane.b32.xlu0 %v583, 124
          %v588 = vpop.permute.xlu0 %587
          %v591 = vadd.f32 %v574, %v586
          %v592 = vadd.f32 %v575, %v588
          %s593 = sld [smem:[#allocation6 + $0x13]]
          %v594 = vstv %s593
          %v595 = vmul.f32 %v328, %v594
          %v596 = vmul.f32 %v329, %v594
          %v599 = vrot.slane %v595, 2
          %v600 = vrot.slane %v596, 2
          %v601 = vsel %vm517, %v599, %v600
          %602 = vrot.lane.b32.xlu0 %v601, 123
          %v603 = vpop.permute.xlu0 %602
          %604 = vrot.lane.b32.xlu0 %v600, 123
          %v605 = vpop.permute.xlu0 %604
          %v608 = vadd.f32 %v591, %v603
          %v609 = vadd.f32 %v592, %v605
          %s610 = sld [smem:[#allocation6 + $0x14]]
          %v611 = vstv %s610
          %v612 = vmul.f32 %v328, %v611
          %v613 = vmul.f32 %v329, %v611
          %v616 = vrot.slane %v612, 2
          %v617 = vrot.slane %v613, 2
          %v618 = vsel %vm517, %v616, %v617
          %619 = vrot.lane.b32.xlu0 %v618, 122
          %v620 = vpop.permute.xlu0 %619
          %621 = vrot.lane.b32.xlu0 %v617, 122
          %v622 = vpop.permute.xlu0 %621
          %v625 = vadd.f32 %v608, %v620
          %v626 = vadd.f32 %v609, %v622
          %s627 = sld [smem:[#allocation6 + $0x15]]
          %v628 = vstv %s627
          %v629 = vmul.f32 %v329, %v628
          %v631 = vrot.slane %v629, 2
          %v633 = vadd.f32 %v509, %v631
          %v634 = vadd.f32 %v510, %v631
          %s635 = sld [smem:[#allocation6 + $0x16]]
          %v636 = vstv %s635
          %v637 = vmul.f32 %v329, %v636
          %v639 = vrot.slane %v637, 2
          %640 = vrot.lane.b32.xlu0 %v639, 127
          %v641 = vpop.permute.xlu0 %640
          %v643 = vadd.f32 %v633, %v641
          %v644 = vadd.f32 %v634, %v641
          %s645 = sld [smem:[#allocation6 + $0x17]]
          %v646 = vstv %s645
          %v647 = vmul.f32 %v329, %v646
          %v649 = vrot.slane %v647, 2
          %650 = vrot.lane.b32.xlu0 %v649, 126
          %v651 = vpop.permute.xlu0 %650
          %v653 = vadd.f32 %v643, %v651
          %v654 = vadd.f32 %v644, %v651
          %s655 = sld [smem:[#allocation6 + $0x18]]
          %v656 = vstv %s655
          %v657 = vmul.f32 %v329, %v656
          %v659 = vrot.slane %v657, 2
          %660 = vrot.lane.b32.xlu0 %v659, 125
          %v661 = vpop.permute.xlu0 %660
          %v663 = vadd.f32 %v653, %v661
          %v664 = vadd.f32 %v654, %v661
          %s665 = sld [smem:[#allocation6 + $0x19]]
          %v666 = vstv %s665
          %v667 = vmul.f32 %v329, %v666
          %v669 = vrot.slane %v667, 2
          %670 = vrot.lane.b32.xlu0 %v669, 124
          %v671 = vpop.permute.xlu0 %670
          %v673 = vadd.f32 %v663, %v671
          %v674 = vadd.f32 %v664, %v671
          %s675 = sld [smem:[#allocation6 + $0x1a]]
          %v676 = vstv %s675
          %v677 = vmul.f32 %v329, %v676
          %v679 = vrot.slane %v677, 2
          %680 = vrot.lane.b32.xlu0 %v679, 123
          %v681 = vpop.permute.xlu0 %680
          %v683 = vadd.f32 %v673, %v681
          %v684 = vadd.f32 %v674, %v681
          %s685 = sld [smem:[#allocation6 + $0x1b]]
          %v686 = vstv %s685
          %v687 = vmul.f32 %v329, %v686
          %v689 = vrot.slane %v687, 2
          %690 = vrot.lane.b32.xlu0 %v689, 122
          %v691 = vpop.permute.xlu0 %690
          %v693 = vadd.f32 %v683, %v691
          %v694 = vadd.f32 %v684, %v691
          %s695 = sld [smem:[#allocation6 + $0x1c]]
          %v696 = vstv %s695
          %v697 = vmul.f32 %v329, %v696
          %v698 = vmul.f32 %v330, %v696
          %vm701 = vcmask 1043456
          %v702 = vrot.slane %v697, 4
          %v703 = vrot.slane %v698, 4
          %v704 = vsel %vm701, %v702, %v703
          %v707 = vadd.f32 %v625, %v702
          %v708 = vadd.f32 %v626, %v704
          %s709 = sld [smem:[#allocation6 + $0x1d]]
          %v710 = vstv %s709
          %v711 = vmul.f32 %v329, %v710
          %v712 = vmul.f32 %v330, %v710
          %v715 = vrot.slane %v711, 4
          %v716 = vrot.slane %v712, 4
          %v717 = vsel %vm701, %v715, %v716
          %718 = vrot.lane.b32.xlu0 %v715, 127
          %v719 = vpop.permute.xlu0 %718
          %720 = vrot.lane.b32.xlu0 %v717, 127
          %v721 = vpop.permute.xlu0 %720
          %v724 = vadd.f32 %v707, %v719
          %v725 = vadd.f32 %v708, %v721
          %s726 = sld [smem:[#allocation6 + $0x1e]]
          %v727 = vstv %s726
          %v728 = vmul.f32 %v329, %v727
          %v729 = vmul.f32 %v330, %v727
          %v732 = vrot.slane %v728, 4
          %v733 = vrot.slane %v729, 4
          %v734 = vsel %vm701, %v732, %v733
          %735 = vrot.lane.b32.xlu0 %v732, 126
          %v736 = vpop.permute.xlu0 %735
          %737 = vrot.lane.b32.xlu0 %v734, 126
          %v738 = vpop.permute.xlu0 %737
          %v741 = vadd.f32 %v724, %v736
          %v742 = vadd.f32 %v725, %v738
          %s743 = sld [smem:[#allocation6 + $0x1f]]
          %v744 = vstv %s743
          %v745 = vmul.f32 %v329, %v744
          %v746 = vmul.f32 %v330, %v744
          %v749 = vrot.slane %v745, 4
          %v750 = vrot.slane %v746, 4
          %v751 = vsel %vm701, %v749, %v750
          %752 = vrot.lane.b32.xlu0 %v749, 125
          %v753 = vpop.permute.xlu0 %752
          %754 = vrot.lane.b32.xlu0 %v751, 125
          %v755 = vpop.permute.xlu0 %754
          %v758 = vadd.f32 %v741, %v753
          %v759 = vadd.f32 %v742, %v755
          %s760 = sld [smem:[#allocation6 + $0x20]]
          %v761 = vstv %s760
          %v762 = vmul.f32 %v329, %v761
          %v763 = vmul.f32 %v330, %v761
          %v766 = vrot.slane %v762, 4
          %v767 = vrot.slane %v763, 4
          %v768 = vsel %vm701, %v766, %v767
          %769 = vrot.lane.b32.xlu0 %v766, 124
          %v770 = vpop.permute.xlu0 %769
          %771 = vrot.lane.b32.xlu0 %v768, 124
          %v772 = vpop.permute.xlu0 %771
          %v775 = vadd.f32 %v758, %v770
          %v776 = vadd.f32 %v759, %v772
          %s777 = sld [smem:[#allocation6 + $0x21]]
          %v778 = vstv %s777
          %v779 = vmul.f32 %v329, %v778
          %v780 = vmul.f32 %v330, %v778
          %v783 = vrot.slane %v779, 4
          %v784 = vrot.slane %v780, 4
          %v785 = vsel %vm701, %v783, %v784
          %786 = vrot.lane.b32.xlu0 %v783, 123
          %v787 = vpop.permute.xlu0 %786
          %788 = vrot.lane.b32.xlu0 %v785, 123
          %v789 = vpop.permute.xlu0 %788
          %v792 = vadd.f32 %v775, %v787
          %v793 = vadd.f32 %v776, %v789
          %s794 = sld [smem:[#allocation6 + $0x22]]
          %v795 = vstv %s794
          %v796 = vmul.f32 %v329, %v795
          %v797 = vmul.f32 %v330, %v795
          %v800 = vrot.slane %v796, 4
          %v801 = vrot.slane %v797, 4
          %v802 = vsel %vm701, %v800, %v801
          %803 = vrot.lane.b32.xlu0 %v800, 122
          %v804 = vpop.permute.xlu0 %803
          %805 = vrot.lane.b32.xlu0 %v802, 122
          %v806 = vpop.permute.xlu0 %805
          %v809 = vadd.f32 %v792, %v804
          %v810 = vadd.f32 %v793, %v806
          %s811 = sld [smem:[#allocation6 + $0x23]]
          %v812 = vstv %s811
          %v813 = vmul.f32 %v329, %v812
          %v814 = vmul.f32 %v330, %v812
          %v817 = vrot.slane %v813, 4
          %v818 = vrot.slane %v814, 4
          %v819 = vsel %vm701, %v817, %v818
          %v822 = vadd.f32 %v693, %v817
          %v823 = vadd.f32 %v694, %v819
          %s824 = sld [smem:[#allocation6 + $0x24]]
          %v825 = vstv %s824
          %v826 = vmul.f32 %v329, %v825
          %v827 = vmul.f32 %v330, %v825
          %v830 = vrot.slane %v826, 4
          %v831 = vrot.slane %v827, 4
          %v832 = vsel %vm701, %v830, %v831
          %833 = vrot.lane.b32.xlu0 %v830, 127
          %v834 = vpop.permute.xlu0 %833
          %835 = vrot.lane.b32.xlu0 %v832, 127
          %v836 = vpop.permute.xlu0 %835
          %v839 = vadd.f32 %v822, %v834
          %v840 = vadd.f32 %v823, %v836
          %s841 = sld [smem:[#allocation6 + $0x25]]
          %v842 = vstv %s841
          %v843 = vmul.f32 %v329, %v842
          %v844 = vmul.f32 %v330, %v842
          %v847 = vrot.slane %v843, 4
          %v848 = vrot.slane %v844, 4
          %v849 = vsel %vm701, %v847, %v848
          %850 = vrot.lane.b32.xlu0 %v847, 126
          %v851 = vpop.permute.xlu0 %850
          %852 = vrot.lane.b32.xlu0 %v849, 126
          %v853 = vpop.permute.xlu0 %852
          %v856 = vadd.f32 %v839, %v851
          %v857 = vadd.f32 %v840, %v853
          %s858 = sld [smem:[#allocation6 + $0x26]]
          %v859 = vstv %s858
          %v860 = vmul.f32 %v329, %v859
          %v861 = vmul.f32 %v330, %v859
          %v864 = vrot.slane %v860, 4
          %v865 = vrot.slane %v861, 4
          %v866 = vsel %vm701, %v864, %v865
          %867 = vrot.lane.b32.xlu0 %v864, 125
          %v868 = vpop.permute.xlu0 %867
          %869 = vrot.lane.b32.xlu0 %v866, 125
          %v870 = vpop.permute.xlu0 %869
          %v873 = vadd.f32 %v856, %v868
          %v874 = vadd.f32 %v857, %v870
          %s875 = sld [smem:[#allocation6 + $0x27]]
          %v876 = vstv %s875
          %v877 = vmul.f32 %v329, %v876
          %v878 = vmul.f32 %v330, %v876
          %v881 = vrot.slane %v877, 4
          %v882 = vrot.slane %v878, 4
          %v883 = vsel %vm701, %v881, %v882
          %884 = vrot.lane.b32.xlu0 %v881, 124
          %v885 = vpop.permute.xlu0 %884
          %886 = vrot.lane.b32.xlu0 %v883, 124
          %v887 = vpop.permute.xlu0 %886
          %v890 = vadd.f32 %v873, %v885
          %v891 = vadd.f32 %v874, %v887
          %s892 = sld [smem:[#allocation6 + $0x28]]
          %v893 = vstv %s892
          %v894 = vmul.f32 %v329, %v893
          %v895 = vmul.f32 %v330, %v893
          %v898 = vrot.slane %v894, 4
          %v899 = vrot.slane %v895, 4
          %v900 = vsel %vm701, %v898, %v899
          %901 = vrot.lane.b32.xlu0 %v898, 123
          %v902 = vpop.permute.xlu0 %901
          %903 = vrot.lane.b32.xlu0 %v900, 123
          %v904 = vpop.permute.xlu0 %903
          %v907 = vadd.f32 %v890, %v902
          %v908 = vadd.f32 %v891, %v904
          %s909 = sld [smem:[#allocation6 + $0x29]]
          %v910 = vstv %s909
          %v911 = vmul.f32 %v329, %v910
          %v912 = vmul.f32 %v330, %v910
          %v915 = vrot.slane %v911, 4
          %v916 = vrot.slane %v912, 4
          %v917 = vsel %vm701, %v915, %v916
          %918 = vrot.lane.b32.xlu0 %v915, 122
          %v919 = vpop.permute.xlu0 %918
          %920 = vrot.lane.b32.xlu0 %v917, 122
          %v921 = vpop.permute.xlu0 %920
          %v924 = vadd.f32 %v907, %v919
          %v925 = vadd.f32 %v908, %v921
          %s926 = sld [smem:[#allocation6 + $0x2a]]
          %v927 = vstv %s926
          %v928 = vmul.f32 %v329, %v927
          %v929 = vmul.f32 %v330, %v927
          %vm932 = vcmask 1041408
          %v933 = vrot.slane %v928, 6
          %v934 = vrot.slane %v929, 6
          %v935 = vsel %vm932, %v933, %v934
          %v938 = vadd.f32 %v809, %v933
          %v939 = vadd.f32 %v810, %v935
          %s940 = sld [smem:[#allocation6 + $0x2b]]
          %v941 = vstv %s940
          %v942 = vmul.f32 %v329, %v941
          %v943 = vmul.f32 %v330, %v941
          %v946 = vrot.slane %v942, 6
          %v947 = vrot.slane %v943, 6
          %v948 = vsel %vm932, %v946, %v947
          %949 = vrot.lane.b32.xlu0 %v946, 127
          %v950 = vpop.permute.xlu0 %949
          %951 = vrot.lane.b32.xlu0 %v948, 127
          %v952 = vpop.permute.xlu0 %951
          %v955 = vadd.f32 %v938, %v950
          %v956 = vadd.f32 %v939, %v952
          %s957 = sld [smem:[#allocation6 + $0x2c]]
          %v958 = vstv %s957
          %v959 = vmul.f32 %v329, %v958
          %v960 = vmul.f32 %v330, %v958
          %v963 = vrot.slane %v959, 6
          %v964 = vrot.slane %v960, 6
          %v965 = vsel %vm932, %v963, %v964
          %966 = vrot.lane.b32.xlu0 %v963, 126
          %v967 = vpop.permute.xlu0 %966
          %968 = vrot.lane.b32.xlu0 %v965, 126
          %v969 = vpop.permute.xlu0 %968
          %v972 = vadd.f32 %v955, %v967
          %v973 = vadd.f32 %v956, %v969
          %s974 = sld [smem:[#allocation6 + $0x2d]]
          %v975 = vstv %s974
          %v976 = vmul.f32 %v329, %v975
          %v977 = vmul.f32 %v330, %v975
          %v980 = vrot.slane %v976, 6
          %v981 = vrot.slane %v977, 6
          %v982 = vsel %vm932, %v980, %v981
          %983 = vrot.lane.b32.xlu0 %v980, 125
          %v984 = vpop.permute.xlu0 %983
          %985 = vrot.lane.b32.xlu0 %v982, 125
          %v986 = vpop.permute.xlu0 %985
          %v989 = vadd.f32 %v972, %v984
          %v990 = vadd.f32 %v973, %v986
          %s991 = sld [smem:[#allocation6 + $0x2e]]
          %v992 = vstv %s991
          %v993 = vmul.f32 %v329, %v992
          %v994 = vmul.f32 %v330, %v992
          %v997 = vrot.slane %v993, 6
          %v998 = vrot.slane %v994, 6
          %v999 = vsel %vm932, %v997, %v998
          %1000 = vrot.lane.b32.xlu0 %v997, 124
          %v1001 = vpop.permute.xlu0 %1000
          %1002 = vrot.lane.b32.xlu0 %v999, 124
          %v1003 = vpop.permute.xlu0 %1002
          %v1006 = vadd.f32 %v989, %v1001
          %v1007 = vadd.f32 %v990, %v1003
          %s1008 = sld [smem:[#allocation6 + $0x2f]]
          %v1009 = vstv %s1008
          %v1010 = vmul.f32 %v329, %v1009
          %v1011 = vmul.f32 %v330, %v1009
          %v1014 = vrot.slane %v1010, 6
          %v1015 = vrot.slane %v1011, 6
          %v1016 = vsel %vm932, %v1014, %v1015
          %1017 = vrot.lane.b32.xlu0 %v1014, 123
          %v1018 = vpop.permute.xlu0 %1017
          %1019 = vrot.lane.b32.xlu0 %v1016, 123
          %v1020 = vpop.permute.xlu0 %1019
          %v1023 = vadd.f32 %v1006, %v1018
          %v1024 = vadd.f32 %v1007, %v1020
          %s1025 = sld [smem:[#allocation6 + $0x30]]
          %v1026 = vstv %s1025
          %v1027 = vmul.f32 %v329, %v1026
          %v1028 = vmul.f32 %v330, %v1026
          %v1031 = vrot.slane %v1027, 6
          %v1032 = vrot.slane %v1028, 6
          %v1033 = vsel %vm932, %v1031, %v1032
          %1034 = vrot.lane.b32.xlu0 %v1031, 122
          %v1035 = vpop.permute.xlu0 %1034
          %1036 = vrot.lane.b32.xlu0 %v1033, 122
          %v1037 = vpop.permute.xlu0 %1036
          %v1040 = vadd.f32 %v1023, %v1035
          %v1041 = vadd.f32 %v1024, %v1037
          %vm1044 = vcmask 1046528
          %v1045 = vrot.slane %v924, 1
          %v1046 = vrot.slane %v925, 1
          %v1047 = vsel %vm1044, %v1045, %v1046
          %v1050 = vadd.f32 %v1040, %v1047
          %v1051 = vadd.f32 %v1041, %v1046
          %s1052 = scalar_lea.vmem [#allocation3], %s326
          %v1053 = vld [vmem:[%s1052] sm:$0xff]
          %v1054 = vld [vmem:[%s1052 + $0x8] sm:$0xff]
          %v1055 = vld [vmem:[%s1052 + $0x10] sm:$0xff]
          %s1056 = sld [smem:[#allocation6 + $0x31]]
          %v1057 = vstv %s1056
          %v1058 = vmul.f32 %v1053, %v1057
          %v1059 = vmul.f32 %v1054, %v1057
          %v1060 = vadd.f32 %v1058, 0.0
          %v1061 = vadd.f32 %v1059, 0.0
          %s1062 = sld [smem:[#allocation6 + $0x32]]
          %v1063 = vstv %s1062
          %v1064 = vmul.f32 %v1053, %v1063
          %v1065 = vmul.f32 %v1054, %v1063
          %1068 = vrot.lane.b32.xlu0 %v1064, 127
          %v1069 = vpop.permute.xlu0 %1068
          %1070 = vrot.lane.b32.xlu0 %v1065, 127
          %v1071 = vpop.permute.xlu0 %1070
          %v1074 = vadd.f32 %v1060, %v1069
          %v1075 = vadd.f32 %v1061, %v1071
          %s1076 = sld [smem:[#allocation6 + $0x33]]
          %v1077 = vstv %s1076
          %v1078 = vmul.f32 %v1053, %v1077
          %v1079 = vmul.f32 %v1054, %v1077
          %1082 = vrot.lane.b32.xlu0 %v1078, 126
          %v1083 = vpop.permute.xlu0 %1082
          %1084 = vrot.lane.b32.xlu0 %v1079, 126
          %v1085 = vpop.permute.xlu0 %1084
          %v1088 = vadd.f32 %v1074, %v1083
          %v1089 = vadd.f32 %v1075, %v1085
          %s1090 = sld [smem:[#allocation6 + $0x34]]
          %v1091 = vstv %s1090
          %v1092 = vmul.f32 %v1053, %v1091
          %v1093 = vmul.f32 %v1054, %v1091
          %1096 = vrot.lane.b32.xlu0 %v1092, 125
          %v1097 = vpop.permute.xlu0 %1096
          %1098 = vrot.lane.b32.xlu0 %v1093, 125
          %v1099 = vpop.permute.xlu0 %1098
          %v1102 = vadd.f32 %v1088, %v1097
          %v1103 = vadd.f32 %v1089, %v1099
          %s1104 = sld [smem:[#allocation6 + $0x35]]
          %v1105 = vstv %s1104
          %v1106 = vmul.f32 %v1053, %v1105
          %v1107 = vmul.f32 %v1054, %v1105
          %1110 = vrot.lane.b32.xlu0 %v1106, 124
          %v1111 = vpop.permute.xlu0 %1110
          %1112 = vrot.lane.b32.xlu0 %v1107, 124
          %v1113 = vpop.permute.xlu0 %1112
          %v1116 = vadd.f32 %v1102, %v1111
          %v1117 = vadd.f32 %v1103, %v1113
          %s1118 = sld [smem:[#allocation6 + $0x36]]
          %v1119 = vstv %s1118
          %v1120 = vmul.f32 %v1053, %v1119
          %v1121 = vmul.f32 %v1054, %v1119
          %1124 = vrot.lane.b32.xlu0 %v1120, 123
          %v1125 = vpop.permute.xlu0 %1124
          %1126 = vrot.lane.b32.xlu0 %v1121, 123
          %v1127 = vpop.permute.xlu0 %1126
          %v1130 = vadd.f32 %v1116, %v1125
          %v1131 = vadd.f32 %v1117, %v1127
          %s1132 = sld [smem:[#allocation6 + $0x37]]
          %v1133 = vstv %s1132
          %v1134 = vmul.f32 %v1053, %v1133
          %v1135 = vmul.f32 %v1054, %v1133
          %1138 = vrot.lane.b32.xlu0 %v1134, 122
          %v1139 = vpop.permute.xlu0 %1138
          %1140 = vrot.lane.b32.xlu0 %v1135, 122
          %v1141 = vpop.permute.xlu0 %1140
          %v1144 = vadd.f32 %v1130, %v1139
          %v1145 = vadd.f32 %v1131, %v1141
          %s1146 = sld [smem:[#allocation6 + $0x38]]
          %v1147 = vstv %s1146
          %v1148 = vmul.f32 %v1053, %v1147
          %v1149 = vmul.f32 %v1054, %v1147
          %v1150 = vadd.f32 %v1148, 0.0
          %v1151 = vadd.f32 %v1149, 0.0
          %s1152 = sld [smem:[#allocation6 + $0x39]]
          %v1153 = vstv %s1152
          %v1154 = vmul.f32 %v1053, %v1153
          %v1155 = vmul.f32 %v1054, %v1153
          %1158 = vrot.lane.b32.xlu0 %v1154, 127
          %v1159 = vpop.permute.xlu0 %1158
          %1160 = vrot.lane.b32.xlu0 %v1155, 127
          %v1161 = vpop.permute.xlu0 %1160
          %v1164 = vadd.f32 %v1150, %v1159
          %v1165 = vadd.f32 %v1151, %v1161
          %s1166 = sld [smem:[#allocation6 + $0x3a]]
          %v1167 = vstv %s1166
          %v1168 = vmul.f32 %v1053, %v1167
          %v1169 = vmul.f32 %v1054, %v1167
          %1172 = vrot.lane.b32.xlu0 %v1168, 126
          %v1173 = vpop.permute.xlu0 %1172
          %1174 = vrot.lane.b32.xlu0 %v1169, 126
          %v1175 = vpop.permute.xlu0 %1174
          %v1178 = vadd.f32 %v1164, %v1173
          %v1179 = vadd.f32 %v1165, %v1175
          %s1180 = sld [smem:[#allocation6 + $0x3b]]
          %v1181 = vstv %s1180
          %v1182 = vmul.f32 %v1053, %v1181
          %v1183 = vmul.f32 %v1054, %v1181
          %1186 = vrot.lane.b32.xlu0 %v1182, 125
          %v1187 = vpop.permute.xlu0 %1186
          %1188 = vrot.lane.b32.xlu0 %v1183, 125
          %v1189 = vpop.permute.xlu0 %1188
          %v1192 = vadd.f32 %v1178, %v1187
          %v1193 = vadd.f32 %v1179, %v1189
          %s1194 = sld [smem:[#allocation6 + $0x3c]]
          %v1195 = vstv %s1194
          %v1196 = vmul.f32 %v1053, %v1195
          %v1197 = vmul.f32 %v1054, %v1195
          %1200 = vrot.lane.b32.xlu0 %v1196, 124
          %v1201 = vpop.permute.xlu0 %1200
          %1202 = vrot.lane.b32.xlu0 %v1197, 124
          %v1203 = vpop.permute.xlu0 %1202
          %v1206 = vadd.f32 %v1192, %v1201
          %v1207 = vadd.f32 %v1193, %v1203
          %s1208 = sld [smem:[#allocation6 + $0x3d]]
          %v1209 = vstv %s1208
          %v1210 = vmul.f32 %v1053, %v1209
          %v1211 = vmul.f32 %v1054, %v1209
          %1214 = vrot.lane.b32.xlu0 %v1210, 123
          %v1215 = vpop.permute.xlu0 %1214
          %1216 = vrot.lane.b32.xlu0 %v1211, 123
          %v1217 = vpop.permute.xlu0 %1216
          %v1220 = vadd.f32 %v1206, %v1215
          %v1221 = vadd.f32 %v1207, %v1217
          %s1222 = sld [smem:[#allocation6 + $0x3e]]
          %v1223 = vstv %s1222
          %v1224 = vmul.f32 %v1053, %v1223
          %v1225 = vmul.f32 %v1054, %v1223
          %1228 = vrot.lane.b32.xlu0 %v1224, 122
          %v1229 = vpop.permute.xlu0 %1228
          %1230 = vrot.lane.b32.xlu0 %v1225, 122
          %v1231 = vpop.permute.xlu0 %1230
          %v1234 = vadd.f32 %v1220, %v1229
          %v1235 = vadd.f32 %v1221, %v1231
          %s1236 = sld [smem:[#allocation6 + $0x3f]]
          %v1237 = vstv %s1236
          %v1238 = vmul.f32 %v1053, %v1237
          %v1239 = vmul.f32 %v1054, %v1237
          %v1242 = vrot.slane %v1238, 2
          %v1243 = vrot.slane %v1239, 2
          %v1244 = vsel %vm517, %v1242, %v1243
          %v1247 = vadd.f32 %v1144, %v1244
          %v1248 = vadd.f32 %v1145, %v1243
          %s1249 = sld [smem:[#allocation6 + $0x40]]
          %v1250 = vstv %s1249
          %v1251 = vmul.f32 %v1053, %v1250
          %v1252 = vmul.f32 %v1054, %v1250
          %v1255 = vrot.slane %v1251, 2
          %v1256 = vrot.slane %v1252, 2
          %v1257 = vsel %vm517, %v1255, %v1256
          %1258 = vrot.lane.b32.xlu0 %v1257, 127
          %v1259 = vpop.permute.xlu0 %1258
          %1260 = vrot.lane.b32.xlu0 %v1256, 127
          %v1261 = vpop.permute.xlu0 %1260
          %v1264 = vadd.f32 %v1247, %v1259
          %v1265 = vadd.f32 %v1248, %v1261
          %s1266 = sld [smem:[#allocation6 + $0x41]]
          %v1267 = vstv %s1266
          %v1268 = vmul.f32 %v1053, %v1267
          %v1269 = vmul.f32 %v1054, %v1267
          %v1272 = vrot.slane %v1268, 2
          %v1273 = vrot.slane %v1269, 2
          %v1274 = vsel %vm517, %v1272, %v1273
          %1275 = vrot.lane.b32.xlu0 %v1274, 126
          %v1276 = vpop.permute.xlu0 %1275
          %1277 = vrot.lane.b32.xlu0 %v1273, 126
          %v1278 = vpop.permute.xlu0 %1277
          %v1281 = vadd.f32 %v1264, %v1276
          %v1282 = vadd.f32 %v1265, %v1278
          %s1283 = sld [smem:[#allocation6 + $0x42]]
          %v1284 = vstv %s1283
          %v1285 = vmul.f32 %v1053, %v1284
          %v1286 = vmul.f32 %v1054, %v1284
          %v1289 = vrot.slane %v1285, 2
          %v1290 = vrot.slane %v1286, 2
          %v1291 = vsel %vm517, %v1289, %v1290
          %1292 = vrot.lane.b32.xlu0 %v1291, 125
          %v1293 = vpop.permute.xlu0 %1292
          %1294 = vrot.lane.b32.xlu0 %v1290, 125
          %v1295 = vpop.permute.xlu0 %1294
          %v1298 = vadd.f32 %v1281, %v1293
          %v1299 = vadd.f32 %v1282, %v1295
          %s1300 = sld [smem:[#allocation6 + $0x43]]
          %v1301 = vstv %s1300
          %v1302 = vmul.f32 %v1053, %v1301
          %v1303 = vmul.f32 %v1054, %v1301
          %v1306 = vrot.slane %v1302, 2
          %v1307 = vrot.slane %v1303, 2
          %v1308 = vsel %vm517, %v1306, %v1307
          %1309 = vrot.lane.b32.xlu0 %v1308, 124
          %v1310 = vpop.permute.xlu0 %1309
          %1311 = vrot.lane.b32.xlu0 %v1307, 124
          %v1312 = vpop.permute.xlu0 %1311
          %v1315 = vadd.f32 %v1298, %v1310
          %v1316 = vadd.f32 %v1299, %v1312
          %s1317 = sld [smem:[#allocation6 + $0x44]]
          %v1318 = vstv %s1317
          %v1319 = vmul.f32 %v1053, %v1318
          %v1320 = vmul.f32 %v1054, %v1318
          %v1323 = vrot.slane %v1319, 2
          %v1324 = vrot.slane %v1320, 2
          %v1325 = vsel %vm517, %v1323, %v1324
          %1326 = vrot.lane.b32.xlu0 %v1325, 123
          %v1327 = vpop.permute.xlu0 %1326
          %1328 = vrot.lane.b32.xlu0 %v1324, 123
          %v1329 = vpop.permute.xlu0 %1328
          %v1332 = vadd.f32 %v1315, %v1327
          %v1333 = vadd.f32 %v1316, %v1329
          %s1334 = sld [smem:[#allocation6 + $0x45]]
          %v1335 = vstv %s1334
          %v1336 = vmul.f32 %v1053, %v1335
          %v1337 = vmul.f32 %v1054, %v1335
          %v1340 = vrot.slane %v1336, 2
          %v1341 = vrot.slane %v1337, 2
          %v1342 = vsel %vm517, %v1340, %v1341
          %1343 = vrot.lane.b32.xlu0 %v1342, 122
          %v1344 = vpop.permute.xlu0 %1343
          %1345 = vrot.lane.b32.xlu0 %v1341, 122
          %v1346 = vpop.permute.xlu0 %1345
          %v1349 = vadd.f32 %v1332, %v1344
          %v1350 = vadd.f32 %v1333, %v1346
          %s1351 = sld [smem:[#allocation6 + $0x46]]
          %v1352 = vstv %s1351
          %v1353 = vmul.f32 %v1054, %v1352
          %v1355 = vrot.slane %v1353, 2
          %v1357 = vadd.f32 %v1234, %v1355
          %v1358 = vadd.f32 %v1235, %v1355
          %s1359 = sld [smem:[#allocation6 + $0x47]]
          %v1360 = vstv %s1359
          %v1361 = vmul.f32 %v1054, %v1360
          %v1363 = vrot.slane %v1361, 2
          %1364 = vrot.lane.b32.xlu0 %v1363, 127
          %v1365 = vpop.permute.xlu0 %1364
          %v1367 = vadd.f32 %v1357, %v1365
          %v1368 = vadd.f32 %v1358, %v1365
          %s1369 = sld [smem:[#allocation6 + $0x48]]
          %v1370 = vstv %s1369
          %v1371 = vmul.f32 %v1054, %v1370
          %v1373 = vrot.slane %v1371, 2
          %1374 = vrot.lane.b32.xlu0 %v1373, 126
          %v1375 = vpop.permute.xlu0 %1374
          %v1377 = vadd.f32 %v1367, %v1375
          %v1378 = vadd.f32 %v1368, %v1375
          %s1379 = sld [smem:[#allocation6 + $0x49]]
          %v1380 = vstv %s1379
          %v1381 = vmul.f32 %v1054, %v1380
          %v1383 = vrot.slane %v1381, 2
          %1384 = vrot.lane.b32.xlu0 %v1383, 125
          %v1385 = vpop.permute.xlu0 %1384
          %v1387 = vadd.f32 %v1377, %v1385
          %v1388 = vadd.f32 %v1378, %v1385
          %s1389 = sld [smem:[#allocation6 + $0x4a]]
          %v1390 = vstv %s1389
          %v1391 = vmul.f32 %v1054, %v1390
          %v1393 = vrot.slane %v1391, 2
          %1394 = vrot.lane.b32.xlu0 %v1393, 124
          %v1395 = vpop.permute.xlu0 %1394
          %v1397 = vadd.f32 %v1387, %v1395
          %v1398 = vadd.f32 %v1388, %v1395
          %s1399 = sld [smem:[#allocation6 + $0x4b]]
          %v1400 = vstv %s1399
          %v1401 = vmul.f32 %v1054, %v1400
          %v1403 = vrot.slane %v1401, 2
          %1404 = vrot.lane.b32.xlu0 %v1403, 123
          %v1405 = vpop.permute.xlu0 %1404
          %v1407 = vadd.f32 %v1397, %v1405
          %v1408 = vadd.f32 %v1398, %v1405
          %s1409 = sld [smem:[#allocation6 + $0x4c]]
          %v1410 = vstv %s1409
          %v1411 = vmul.f32 %v1054, %v1410
          %v1413 = vrot.slane %v1411, 2
          %1414 = vrot.lane.b32.xlu0 %v1413, 122
          %v1415 = vpop.permute.xlu0 %1414
          %v1417 = vadd.f32 %v1407, %v1415
          %v1418 = vadd.f32 %v1408, %v1415
          %s1419 = sld [smem:[#allocation6 + $0x4d]]
          %v1420 = vstv %s1419
          %v1421 = vmul.f32 %v1054, %v1420
          %v1422 = vmul.f32 %v1055, %v1420
          %v1425 = vrot.slane %v1421, 4
          %v1426 = vrot.slane %v1422, 4
          %v1427 = vsel %vm701, %v1425, %v1426
          %v1430 = vadd.f32 %v1349, %v1425
          %v1431 = vadd.f32 %v1350, %v1427
          %s1432 = sld [smem:[#allocation6 + $0x4e]]
          %v1433 = vstv %s1432
          %v1434 = vmul.f32 %v1054, %v1433
          %v1435 = vmul.f32 %v1055, %v1433
          %v1438 = vrot.slane %v1434, 4
          %v1439 = vrot.slane %v1435, 4
          %v1440 = vsel %vm701, %v1438, %v1439
          %1441 = vrot.lane.b32.xlu0 %v1438, 127
          %v1442 = vpop.permute.xlu0 %1441
          %1443 = vrot.lane.b32.xlu0 %v1440, 127
          %v1444 = vpop.permute.xlu0 %1443
          %v1447 = vadd.f32 %v1430, %v1442
          %v1448 = vadd.f32 %v1431, %v1444
          %s1449 = sld [smem:[#allocation6 + $0x4f]]
          %v1450 = vstv %s1449
          %v1451 = vmul.f32 %v1054, %v1450
          %v1452 = vmul.f32 %v1055, %v1450
          %v1455 = vrot.slane %v1451, 4
          %v1456 = vrot.slane %v1452, 4
          %v1457 = vsel %vm701, %v1455, %v1456
          %1458 = vrot.lane.b32.xlu0 %v1455, 126
          %v1459 = vpop.permute.xlu0 %1458
          %1460 = vrot.lane.b32.xlu0 %v1457, 126
          %v1461 = vpop.permute.xlu0 %1460
          %v1464 = vadd.f32 %v1447, %v1459
          %v1465 = vadd.f32 %v1448, %v1461
          %s1466 = sld [smem:[#allocation6 + $0x50]]
          %v1467 = vstv %s1466
          %v1468 = vmul.f32 %v1054, %v1467
          %v1469 = vmul.f32 %v1055, %v1467
          %v1472 = vrot.slane %v1468, 4
          %v1473 = vrot.slane %v1469, 4
          %v1474 = vsel %vm701, %v1472, %v1473
          %1475 = vrot.lane.b32.xlu0 %v1472, 125
          %v1476 = vpop.permute.xlu0 %1475
          %1477 = vrot.lane.b32.xlu0 %v1474, 125
          %v1478 = vpop.permute.xlu0 %1477
          %v1481 = vadd.f32 %v1464, %v1476
          %v1482 = vadd.f32 %v1465, %v1478
          %s1483 = sld [smem:[#allocation6 + $0x51]]
          %v1484 = vstv %s1483
          %v1485 = vmul.f32 %v1054, %v1484
          %v1486 = vmul.f32 %v1055, %v1484
          %v1489 = vrot.slane %v1485, 4
          %v1490 = vrot.slane %v1486, 4
          %v1491 = vsel %vm701, %v1489, %v1490
          %1492 = vrot.lane.b32.xlu0 %v1489, 124
          %v1493 = vpop.permute.xlu0 %1492
          %1494 = vrot.lane.b32.xlu0 %v1491, 124
          %v1495 = vpop.permute.xlu0 %1494
          %v1498 = vadd.f32 %v1481, %v1493
          %v1499 = vadd.f32 %v1482, %v1495
          %s1500 = sld [smem:[#allocation6 + $0x52]]
          %v1501 = vstv %s1500
          %v1502 = vmul.f32 %v1054, %v1501
          %v1503 = vmul.f32 %v1055, %v1501
          %v1506 = vrot.slane %v1502, 4
          %v1507 = vrot.slane %v1503, 4
          %v1508 = vsel %vm701, %v1506, %v1507
          %1509 = vrot.lane.b32.xlu0 %v1506, 123
          %v1510 = vpop.permute.xlu0 %1509
          %1511 = vrot.lane.b32.xlu0 %v1508, 123
          %v1512 = vpop.permute.xlu0 %1511
          %v1515 = vadd.f32 %v1498, %v1510
          %v1516 = vadd.f32 %v1499, %v1512
          %s1517 = sld [smem:[#allocation6 + $0x53]]
          %v1518 = vstv %s1517
          %v1519 = vmul.f32 %v1054, %v1518
          %v1520 = vmul.f32 %v1055, %v1518
          %v1523 = vrot.slane %v1519, 4
          %v1524 = vrot.slane %v1520, 4
          %v1525 = vsel %vm701, %v1523, %v1524
          %1526 = vrot.lane.b32.xlu0 %v1523, 122
          %v1527 = vpop.permute.xlu0 %1526
          %1528 = vrot.lane.b32.xlu0 %v1525, 122
          %v1529 = vpop.permute.xlu0 %1528
          %v1532 = vadd.f32 %v1515, %v1527
          %v1533 = vadd.f32 %v1516, %v1529
          %s1534 = sld [smem:[#allocation6 + $0x54]]
          %v1535 = vstv %s1534
          %v1536 = vmul.f32 %v1054, %v1535
          %v1537 = vmul.f32 %v1055, %v1535
          %v1540 = vrot.slane %v1536, 4
          %v1541 = vrot.slane %v1537, 4
          %v1542 = vsel %vm701, %v1540, %v1541
          %v1545 = vadd.f32 %v1417, %v1540
          %v1546 = vadd.f32 %v1418, %v1542
          %s1547 = sld [smem:[#allocation6 + $0x55]]
          %v1548 = vstv %s1547
          %v1549 = vmul.f32 %v1054, %v1548
          %v1550 = vmul.f32 %v1055, %v1548
          %v1553 = vrot.slane %v1549, 4
          %v1554 = vrot.slane %v1550, 4
          %v1555 = vsel %vm701, %v1553, %v1554
          %1556 = vrot.lane.b32.xlu0 %v1553, 127
          %v1557 = vpop.permute.xlu0 %1556
          %1558 = vrot.lane.b32.xlu0 %v1555, 127
          %v1559 = vpop.permute.xlu0 %1558
          %v1562 = vadd.f32 %v1545, %v1557
          %v1563 = vadd.f32 %v1546, %v1559
          %s1564 = sld [smem:[#allocation6 + $0x56]]
          %v1565 = vstv %s1564
          %v1566 = vmul.f32 %v1054, %v1565
          %v1567 = vmul.f32 %v1055, %v1565
          %v1570 = vrot.slane %v1566, 4
          %v1571 = vrot.slane %v1567, 4
          %v1572 = vsel %vm701, %v1570, %v1571
          %1573 = vrot.lane.b32.xlu0 %v1570, 126
          %v1574 = vpop.permute.xlu0 %1573
          %1575 = vrot.lane.b32.xlu0 %v1572, 126
          %v1576 = vpop.permute.xlu0 %1575
          %v1579 = vadd.f32 %v1562, %v1574
          %v1580 = vadd.f32 %v1563, %v1576
          %s1581 = sld [smem:[#allocation6 + $0x57]]
          %v1582 = vstv %s1581
          %v1583 = vmul.f32 %v1054, %v1582
          %v1584 = vmul.f32 %v1055, %v1582
          %v1587 = vrot.slane %v1583, 4
          %v1588 = vrot.slane %v1584, 4
          %v1589 = vsel %vm701, %v1587, %v1588
          %1590 = vrot.lane.b32.xlu0 %v1587, 125
          %v1591 = vpop.permute.xlu0 %1590
          %1592 = vrot.lane.b32.xlu0 %v1589, 125
          %v1593 = vpop.permute.xlu0 %1592
          %v1596 = vadd.f32 %v1579, %v1591
          %v1597 = vadd.f32 %v1580, %v1593
          %s1598 = sld [smem:[#allocation6 + $0x58]]
          %v1599 = vstv %s1598
          %v1600 = vmul.f32 %v1054, %v1599
          %v1601 = vmul.f32 %v1055, %v1599
          %v1604 = vrot.slane %v1600, 4
          %v1605 = vrot.slane %v1601, 4
          %v1606 = vsel %vm701, %v1604, %v1605
          %1607 = vrot.lane.b32.xlu0 %v1604, 124
          %v1608 = vpop.permute.xlu0 %1607
          %1609 = vrot.lane.b32.xlu0 %v1606, 124
          %v1610 = vpop.permute.xlu0 %1609
          %v1613 = vadd.f32 %v1596, %v1608
          %v1614 = vadd.f32 %v1597, %v1610
          %s1615 = sld [smem:[#allocation6 + $0x59]]
          %v1616 = vstv %s1615
          %v1617 = vmul.f32 %v1054, %v1616
          %v1618 = vmul.f32 %v1055, %v1616
          %v1621 = vrot.slane %v1617, 4
          %v1622 = vrot.slane %v1618, 4
          %v1623 = vsel %vm701, %v1621, %v1622
          %1624 = vrot.lane.b32.xlu0 %v1621, 123
          %v1625 = vpop.permute.xlu0 %1624
          %1626 = vrot.lane.b32.xlu0 %v1623, 123
          %v1627 = vpop.permute.xlu0 %1626
          %v1630 = vadd.f32 %v1613, %v1625
          %v1631 = vadd.f32 %v1614, %v1627
          %s1632 = sld [smem:[#allocation6 + $0x5a]]
          %v1633 = vstv %s1632
          %v1634 = vmul.f32 %v1054, %v1633
          %v1635 = vmul.f32 %v1055, %v1633
          %v1638 = vrot.slane %v1634, 4
          %v1639 = vrot.slane %v1635, 4
          %v1640 = vsel %vm701, %v1638, %v1639
          %1641 = vrot.lane.b32.xlu0 %v1638, 122
          %v1642 = vpop.permute.xlu0 %1641
          %1643 = vrot.lane.b32.xlu0 %v1640, 122
          %v1644 = vpop.permute.xlu0 %1643
          %v1647 = vadd.f32 %v1630, %v1642
          %v1648 = vadd.f32 %v1631, %v1644
          %s1649 = sld [smem:[#allocation6 + $0x5b]]
          %v1650 = vstv %s1649
          %v1651 = vmul.f32 %v1054, %v1650
          %v1652 = vmul.f32 %v1055, %v1650
          %v1655 = vrot.slane %v1651, 6
          %v1656 = vrot.slane %v1652, 6
          %v1657 = vsel %vm932, %v1655, %v1656
          %v1660 = vadd.f32 %v1532, %v1655
          %v1661 = vadd.f32 %v1533, %v1657
          %s1662 = sld [smem:[#allocation6 + $0x5c]]
          %v1663 = vstv %s1662
          %v1664 = vmul.f32 %v1054, %v1663
          %v1665 = vmul.f32 %v1055, %v1663
          %v1668 = vrot.slane %v1664, 6
          %v1669 = vrot.slane %v1665, 6
          %v1670 = vsel %vm932, %v1668, %v1669
          %1671 = vrot.lane.b32.xlu0 %v1668, 127
          %v1672 = vpop.permute.xlu0 %1671
          %1673 = vrot.lane.b32.xlu0 %v1670, 127
          %v1674 = vpop.permute.xlu0 %1673
          %v1677 = vadd.f32 %v1660, %v1672
          %v1678 = vadd.f32 %v1661, %v1674
          %s1679 = sld [smem:[#allocation6 + $0x5d]]
          %v1680 = vstv %s1679
          %v1681 = vmul.f32 %v1054, %v1680
          %v1682 = vmul.f32 %v1055, %v1680
          %v1685 = vrot.slane %v1681, 6
          %v1686 = vrot.slane %v1682, 6
          %v1687 = vsel %vm932, %v1685, %v1686
          %1688 = vrot.lane.b32.xlu0 %v1685, 126
          %v1689 = vpop.permute.xlu0 %1688
          %1690 = vrot.lane.b32.xlu0 %v1687, 126
          %v1691 = vpop.permute.xlu0 %1690
          %v1694 = vadd.f32 %v1677, %v1689
          %v1695 = vadd.f32 %v1678, %v1691
          %s1696 = sld [smem:[#allocation6 + $0x5e]]
          %v1697 = vstv %s1696
          %v1698 = vmul.f32 %v1054, %v1697
          %v1699 = vmul.f32 %v1055, %v1697
          %v1702 = vrot.slane %v1698, 6
          %v1703 = vrot.slane %v1699, 6
          %v1704 = vsel %vm932, %v1702, %v1703
          %1705 = vrot.lane.b32.xlu0 %v1702, 125
          %v1706 = vpop.permute.xlu0 %1705
          %1707 = vrot.lane.b32.xlu0 %v1704, 125
          %v1708 = vpop.permute.xlu0 %1707
          %v1711 = vadd.f32 %v1694, %v1706
          %v1712 = vadd.f32 %v1695, %v1708
          %s1713 = sld [smem:[#allocation6 + $0x5f]]
          %v1714 = vstv %s1713
          %v1715 = vmul.f32 %v1054, %v1714
          %v1716 = vmul.f32 %v1055, %v1714
          %v1719 = vrot.slane %v1715, 6
          %v1720 = vrot.slane %v1716, 6
          %v1721 = vsel %vm932, %v1719, %v1720
          %1722 = vrot.lane.b32.xlu0 %v1719, 124
          %v1723 = vpop.permute.xlu0 %1722
          %1724 = vrot.lane.b32.xlu0 %v1721, 124
          %v1725 = vpop.permute.xlu0 %1724
          %v1728 = vadd.f32 %v1711, %v1723
          %v1729 = vadd.f32 %v1712, %v1725
          %s1730 = sld [smem:[#allocation6 + $0x60]]
          %v1731 = vstv %s1730
          %v1732 = vmul.f32 %v1054, %v1731
          %v1733 = vmul.f32 %v1055, %v1731
          %v1736 = vrot.slane %v1732, 6
          %v1737 = vrot.slane %v1733, 6
          %v1738 = vsel %vm932, %v1736, %v1737
          %1739 = vrot.lane.b32.xlu0 %v1736, 123
          %v1740 = vpop.permute.xlu0 %1739
          %1741 = vrot.lane.b32.xlu0 %v1738, 123
          %v1742 = vpop.permute.xlu0 %1741
          %v1745 = vadd.f32 %v1728, %v1740
          %v1746 = vadd.f32 %v1729, %v1742
          %s1747 = sld [smem:[#allocation6 + $0x61]]
          %v1748 = vstv %s1747
          %v1749 = vmul.f32 %v1054, %v1748
          %v1750 = vmul.f32 %v1055, %v1748
          %v1753 = vrot.slane %v1749, 6
          %v1754 = vrot.slane %v1750, 6
          %v1755 = vsel %vm932, %v1753, %v1754
          %1756 = vrot.lane.b32.xlu0 %v1753, 122
          %v1757 = vpop.permute.xlu0 %1756
          %1758 = vrot.lane.b32.xlu0 %v1755, 122
          %v1759 = vpop.permute.xlu0 %1758
          %v1762 = vadd.f32 %v1745, %v1757
          %v1763 = vadd.f32 %v1746, %v1759
          %v1766 = vrot.slane %v1647, 1
          %v1767 = vrot.slane %v1648, 1
          %v1768 = vsel %vm1044, %v1766, %v1767
          %v1771 = vadd.f32 %v1762, %v1768
          %v1772 = vadd.f32 %v1763, %v1767
          %v1773 = vadd.f32 %v1050, %v1771
          %v1774 = vadd.f32 %v1051, %v1772
          %s1775 = sld [smem:[#allocation5]]
          %v1776 = vstv %s1775
          %v1777 = vadd.f32 %v1773, %v1776
          %v1778 = vadd.f32 %v1774, %v1776
          %v1779 = vxor.u32 %v1777, 2147483648
          %v1780 = vxor.u32 %v1778, 2147483648
          %v1781 = vmul.f32 %v1779, 1.442695
          %v1782 = vpow.pop %v1781
          %v1783 = vmul.f32 %v1780, 1.442695
          %v1784 = vpow.pop %v1783
          %v1785 = vadd.f32 %v1782, 1.0
          %v1786 = vadd.f32 %v1784, 1.0
          %v1787 = vrcp.pop %v1785
          %v1788 = vmul.f32 1.0, %v1787
          %v1789 = vrcp.pop %v1786
          %v1790 = vmul.f32 1.0, %v1789
          loop: start=0, step=1, limit=4
          $region60: #{spatial_gate_forward.1} parent=58 // loop_pre_header
            _
          $region61: #{spatial_gate_forward.1} parent=58 // loop_header
            %s1792 = sphi 0, %s1796
            %p1793 = scmp.ge.s32.totalorder %s1792, 4
          $region62: #{spatial_gate_forward.1} parent=58 // loop_header_branch
            %1795 = sbr.rel (%p1793) target = $region66
          $region63: #{spatial_gate_forward.1} parent=58 // loop_body
            %s1797 = sadd.s32 %s325, %s1792
            %s1798 = smul.u32 %s1797, 8
            %s1799 = scalar_lea.vmem [#allocation4], %s1798
            %v1800 = vld [vmem:[%s1799] sm:$0xff]
            %vm1803 = vcmask 1042432
            %v1804 = vrot.slane %v1788, 5
            %v1805 = vrot.slane %v1790, 5
            %v1806 = vsel %vm1803, %v1804, %v1805
            %v1808 = vmul.f32 %v1800, %v1806
            %s1809 = smul.u32 %s1792, 8
            %s1810 = scalar_lea.vmem %s232, %s1809 [#allocation11]
            %vm1811 = vcmask 130048
            %1812 = vst.msk [vmem:[%s1810] sm:$0xff] %vm1811, %v1808
          $region64: #{spatial_gate_forward.1} parent=58 // loop_footer
            %s1796 = sadd.s32 1, %s1792
          $region65: #{spatial_gate_forward.1} parent=58 // loop_footer_branch
            %1791 = sbr.rel target = $region61
          $region66: #{spatial_gate_forward.1} parent=58 // loop_exit
            _
        $region59: #{spatial_gate_forward.1} parent=31 // pred_fallthru
          _
        %s1813 = sand.u32 %s124, 1
        %s1814 = scalar_lea.sflag [#allocation8], %s1813
        %s1815 = sand.u32 %s124, 1
        %s1816 = smul.addr %s1815, 32
        %s1817 = scalar_lea.vmem [#allocation11], %s1816
        // Predicated region
        $region67: #{spatial_gate_forward.1} parent=31 // pred_check
          %p1818 = pneg %p134
        $region68: #{spatial_gate_forward.1} parent=31 // pred_check_branch
          %1820 = sbr.rel (%p1818) target = $region70
        $region69: #{spatial_gate_forward.1} parent=31 // pred_region
          %s1821 = ssub.s32 %s27, 1
          %p1822 = scmp.gt.s32.totalorder %s1821, 0
          %s1823 = scalar_select %p1822, %s1821, 0
          %s1825 = ssub.s32 512, 512
          %1826 = vsyncadd %s1814, %s1825
          %s1827 = smul.addr %s26, 8
          %s1828 = sadd.s32 %s1823, %s1827
          %s1829 = smul.addr %s1828, 128
          %s1830 = scalar_lea.hbm %s3, %s1829
          %s1831 = sshll.u32 %s1817, 4
          %s1832 = int_to_ptr.vmem [resolvable:$true] %s1831
          %1837 = dma.vmem_to_hbm [thread:$0]  %s1832, 512, %s1830, %s1814, 128, 256, 8
        $region70: #{spatial_gate_forward.1} parent=31 // pred_fallthru
          _
      $region32: #{spatial_gate_forward.1} parent=5 // pred_fallthru
        _
      %p1838 = scmp.le.s32.totalorder 2, %s17
      // Predicated region
      $region71: #{spatial_gate_forward.1} parent=5 // pred_check
        %p1839 = pneg %p1838
      $region72: #{spatial_gate_forward.1} parent=5 // pred_check_branch
        %1841 = sbr.rel (%p1839) target = $region74
      $region73: #{spatial_gate_forward.1} parent=5 // pred_region
        %s1842 = ssub.s32 %s17, 2
        // Predicated region
        $region75: #{spatial_gate_forward.1} parent=73 // pred_check
          %p1843 = pneg %p140
        $region76: #{spatial_gate_forward.1} parent=73 // pred_check_branch
          %1845 = sbr.rel (%p1843) target = $region78
        $region77: #{spatial_gate_forward.1} parent=73 // pred_region
          %s1846 = sand.u32 %s125, 1
          %s1847 = scalar_lea.sflag [#allocation8], %s1846
          %s1848 = sand.u32 %s125, 1
          %s1849 = smul.addr %s1848, 32
          %s1850 = scalar_lea.vmem [#allocation11], %s1849
          %1851 = dma.done %s1847, 512
        $region78: #{spatial_gate_forward.1} parent=73 // pred_fallthru
          _
      $region74: #{spatial_gate_forward.1} parent=5 // pred_fallthru
        _
    $region6: #{spatial_gate_forward.1} parent=1 // loop_footer
      %s21 = sadd.s32 1, %s17
    $region7: #{spatial_gate_forward.1} parent=1 // loop_footer_branch
      %16 = sbr.rel target = $region3
    $region8: #{spatial_gate_forward.1} parent=1 // loop_exit
      _
    %1852 = vsyncpa [#allocation7], 1
    %s1853 = scalar_lea.sflag [#allocation7], 1
    %1854 = vsyncpa %s1853, 1
    %1855 = vsyncpa [#allocation8], 1
    %s1856 = scalar_lea.sflag [#allocation8], 1
    %1857 = vsyncpa %s1856, 1
    %1858 = vsyncpa [#allocation9], 1
    %s1859 = scalar_lea.sflag [#allocation9], 1
    %1860 = vsyncpa %s1859, 1

</llo_original>
